<compile_context>
chip_gen: v7x
topology: tpu7x:2x2x1
jax: 0.10.0
libtpu: 0.0.40
codegen_flags: <defaults>
</compile_context>

<pallas_src>
import jax
import jax.numpy as jnp
from jax.experimental import pallas as pl
from jax.experimental.pallas import tpu as pltpu


# ---------------------------------------------------------------------------
# Kernel helpers (trace-time unrolled; all slices are static).
# ---------------------------------------------------------------------------
def _conv1d_im2col(a, w_ref, b_ref):
    """a: (T, C_in) time-major; w_ref: (K*C_in, C_out) im2col matrix.
    Returns (T-K+1, C_out) = valid cross-correlation + bias, f32 accumulate."""
    c_in = a.shape[1]
    ksize = w_ref.shape[0] // c_in
    t_out = a.shape[0] - ksize + 1
    # columns ordered k-major then c_in -> matches wrapper's (K, C_in, C_out) fold
    a_win = jnp.concatenate([a[k:k + t_out, :] for k in range(ksize)], axis=1)
    return jax.lax.dot_general(a_win, w_ref[...], (((1,), (0,)), ((), ())),
                               preferred_element_type=jnp.float32) + b_ref[...]


def _maxpool2(a):
    """MaxPool1d(kernel=2, stride=2) along the time (sublane) axis of (T, C)."""
    t_out = a.shape[0] // 2
    rows = [jnp.maximum(a[2 * j:2 * j + 1, :], a[2 * j + 1:2 * j + 2, :])
            for j in range(t_out)]
    return rows[0] if t_out == 1 else jnp.concatenate(rows, axis=0)


def cnn_kernel(x_ref, w1_ref, b1_ref, w2_ref, b2_ref, w4_ref, b4_ref,
               w5_ref, b5_ref, wfc1_ref, bfc1_ref, wfc2_ref, bfc2_ref, o_ref):
    x = x_ref[0]                                  # (N, D) -- one batch item
    n, d = x.shape
    k1 = w1_ref.shape[1] // d                     # Conv2d time-kernel size (4)
    t1 = n - k1 + 1

    # layer1: Conv2d(1->16, (4, D)) as one im2col matmul (K = 4*D = 128 lanes).
    # The width kernel spans the full D, so the PyTorch squeeze of the singleton
    # width dim is implicit.  Weight stays in native row-major (16, 4*D);
    # transposed contraction on the MXU.
    x_win = jnp.concatenate([x[k:k + t1, :] for k in range(k1)], axis=1)  # (t1, 4D)
    y = jax.lax.dot_general(x_win, w1_ref[...], (((1,), (1,)), ((), ())),
                            preferred_element_type=jnp.float32) + b1_ref[...]

    y = _conv1d_im2col(y, w2_ref, b2_ref)         # layer2: Conv1d(16->16, 4)
    y = _maxpool2(y)                              # layer3: MaxPool1d(2)
    y = _conv1d_im2col(y, w4_ref, b4_ref)         # layer4: Conv1d(16->32, 3)
    y = _conv1d_im2col(y, w5_ref, b5_ref)         # layer5: Conv1d(32->32, 3)
    y = _maxpool2(y)                              # layer6: MaxPool1d(2) -> (F, 32)
    y = jnp.maximum(y, y * jnp.float32(0.01))     # LeakyReLU(0.01)

    # Fullcon[0]: Linear(32*F -> 32).  The F time rows are packed along lanes
    # (one matmul, K = F*32) with the weight pre-folded to (F*32, 32) matching
    # PyTorch's channel-major flatten of (C=32, F).
    f = y.shape[0]
    y_flat = jnp.concatenate([y[t:t + 1, :] for t in range(f)], axis=1)  # (1, F*32)
    h = jax.lax.dot_general(y_flat, wfc1_ref[...], (((1,), (0,)), ((), ())),
                            preferred_element_type=jnp.float32) + bfc1_ref[...]

    # Fullcon[1]: Linear(32 -> num_classes). Weight kept in native (C_pad, 32)
    # layout (transposed contraction), zero-padded to 128 classes so the output
    # store is a full lane-dense (1, 128) vst.
    logits = jax.lax.dot_general(h, wfc2_ref[...], (((1,), (1,)), ((), ())),
                                 preferred_element_type=jnp.float32) + bfc2_ref[...]
    o_ref[0] = logits                             # (1, 128)


# ---------------------------------------------------------------------------
# Wrapper: parameter re-layout (tiny, one-time under jit) + pallas_call.
# ---------------------------------------------------------------------------
@jax.jit
def cnn_forward(x, params):
    (w1, b1, w2, b2, w4, b4, w5, b5, wfc1, bfc1, wfc2, bfc2) = params
    B, N, D = x.shape
    num_classes = wfc2.shape[0]
    C_PAD = 128

    t1 = N - 3
    t2 = t1 - 3
    t3 = t2 // 2
    t4 = t3 - 2
    t5 = t4 - 2
    f = t5 // 2                       # actual pooled length feeding Fullcon[0]

    def conv1d_im2col_weight(w):
        # (C_out, C_in, K) -> (K*C_in, C_out); row index = k*C_in + c_in.
        c_out, c_in, k = w.shape
        return jnp.transpose(w, (2, 1, 0)).reshape(k * c_in, c_out)

    w1_2d = w1.reshape(16, 4 * D)                       # contiguous reshape only
    w2_m = conv1d_im2col_weight(w2)                     # (64, 16)
    w4_m = conv1d_im2col_weight(w4)                     # (48, 32)
    w5_m = conv1d_im2col_weight(w5)                     # (96, 32)
    # PyTorch flatten of (C=32, F) is channel-major: in_idx = c*F + t.
    # Kernel packs rows t-major along lanes: col = t*32 + c.
    wfc1_m = jnp.transpose(wfc1.reshape(32, 32, f), (2, 1, 0)).reshape(f * 32, 32)
    wfc2_p = jnp.zeros((C_PAD, 32), jnp.float32).at[:num_classes].set(wfc2)
    bfc2_p = jnp.zeros((1, C_PAD), jnp.float32).at[0, :num_classes].set(bfc2)
    b1r, b2r, b4r, b5r, bfc1r = (v.reshape(1, -1) for v in (b1, b2, b4, b5, bfc1))

    operands = (x, w1_2d, b1r, w2_m, b2r, w4_m, b4r, w5_m, b5r,
                wfc1_m, bfc1r, wfc2_p, bfc2_p)

    def _resident(a):
        # whole array resident in VMEM, same block for every grid step
        return pl.BlockSpec(a.shape, lambda b, _nd=a.ndim: (0,) * _nd)

    flops_item = (2 * t1 * (4 * D) * 16
                  + 2 * t2 * 64 * 16
                  + 2 * t4 * 48 * 32
                  + 2 * t5 * 96 * 32
                  + 2 * (f * 32) * 32
                  + 2 * 32 * C_PAD)
    bytes_accessed = 4 * (int(x.size) + sum(int(a.size) for a in operands[1:])
                          + B * C_PAD)

    out = pl.pallas_call(
        cnn_kernel,
        out_shape=jax.ShapeDtypeStruct((B, 1, C_PAD), jnp.float32),
        grid=(B,),
        in_specs=[pl.BlockSpec((1, N, D), lambda b: (b, 0, 0))]
                 + [_resident(a) for a in operands[1:]],
        out_specs=pl.BlockSpec((1, 1, C_PAD), lambda b: (b, 0, 0)),
        compiler_params=pltpu.CompilerParams(dimension_semantics=("parallel",)),
        cost_estimate=pl.CostEstimate(flops=B * flops_item, transcendentals=0,
                                      bytes_accessed=bytes_accessed),
    )(*operands)
    return out[:, 0, :num_classes]


# ---------------------------------------------------------------------------
# Pure-JAX reference (mirrors the PyTorch module with the two bugfixes).
# ---------------------------------------------------------------------------
def reference_forward(x, params):
    (w1, b1, w2, b2, w4, b4, w5, b5, wfc1, bfc1, wfc2, bfc2) = params
    y = jax.lax.conv_general_dilated(x[:, None, :, :], w1, (1, 1), 'VALID',
                                     dimension_numbers=('NCHW', 'OIHW', 'NCHW'))
    y = (y + b1[None, :, None, None])[:, :, :, 0]            # squeeze width

    def conv1d(a, w, b):
        o = jax.lax.conv_general_dilated(a, w, (1,), 'VALID',
                                         dimension_numbers=('NCH', 'OIH', 'NCH'))
        return o + b[None, :, None]

    def maxpool2(a):
        return jax.lax.reduce_window(a, -jnp.inf, jax.lax.max,
                                     (1, 1, 2), (1, 1, 2), 'VALID')

    y = conv1d(y, w2, b2)
    y = maxpool2(y)
    y = conv1d(y, w4, b4)
    y = conv1d(y, w5, b5)
    y = maxpool2(y)
    y = jnp.where(y > 0, y, 0.01 * y)
    yf = y.reshape(y.shape[0], -1)                            # channel-major flatten
    h = yf @ wfc1.T + bfc1
    return h @ wfc2.T + bfc2


if __name__ == "__main__":
    # Small shapes consistent with the module; TIME_SLICES must be >= 18 for the
    # conv/pool stack to produce a non-empty feature map (24 -> F = 2).
    B, TIME_SLICES, DIM, NUM_CLASSES = 2, 24, 32, 10
    t1 = TIME_SLICES - 3
    t2 = t1 - 3
    f = ((t2 // 2) - 4) // 2                                  # actual pooled length

    key = jax.random.PRNGKey(0)
    keys = jax.random.split(key, 13)

    def uniform(k, shape, fan_in):
        bound = float(fan_in) ** -0.5
        return jax.random.uniform(k, shape, jnp.float32, -bound, bound)

    x = jax.random.normal(keys[0], (B, TIME_SLICES, DIM), dtype=jnp.float32)
    w1 = uniform(keys[1], (16, 1, 4, DIM), 4 * DIM)
    b1 = uniform(keys[2], (16,), 4 * DIM)
    w2 = uniform(keys[3], (16, 16, 4), 16 * 4)
    b2 = uniform(keys[4], (16,), 16 * 4)
    w4 = uniform(keys[5], (32, 16, 3), 16 * 3)
    b4 = uniform(keys[6], (32,), 16 * 3)
    w5 = uniform(keys[7], (32, 32, 3), 32 * 3)
    b5 = uniform(keys[8], (32,), 32 * 3)
    wfc1 = uniform(keys[9], (32, 32 * f), 32 * f)
    bfc1 = uniform(keys[10], (32,), 32 * f)
    wfc2 = uniform(keys[11], (NUM_CLASSES, 32), 32)
    bfc2 = uniform(keys[12], (NUM_CLASSES,), 32)
    params = (w1, b1, w2, b2, w4, b4, w5, b5, wfc1, bfc1, wfc2, bfc2)

    out = cnn_forward(x, params)
    out = jax.block_until_ready(out)

    ref = reference_forward(x, params)
    assert out.shape == (B, NUM_CLASSES)
    assert jnp.allclose(out, ref, atol=1e-4, rtol=1e-4), \
        float(jnp.max(jnp.abs(out - ref)))

    print("KERNEL_OK")
</pallas_src>

<mosaic_0001>
module attributes {stable_mosaic.version = 11 : i64} {
  func.func @cnn_kernel(%arg0: i32, %arg1: memref<1x24x32xf32, #tpu.memory_space<vmem>>, %arg2: memref<16x128xf32, #tpu.memory_space<vmem>>, %arg3: memref<1x16xf32, #tpu.memory_space<vmem>>, %arg4: memref<64x16xf32, #tpu.memory_space<vmem>>, %arg5: memref<1x16xf32, #tpu.memory_space<vmem>>, %arg6: memref<48x32xf32, #tpu.memory_space<vmem>>, %arg7: memref<1x32xf32, #tpu.memory_space<vmem>>, %arg8: memref<96x32xf32, #tpu.memory_space<vmem>>, %arg9: memref<1x32xf32, #tpu.memory_space<vmem>>, %arg10: memref<64x32xf32, #tpu.memory_space<vmem>>, %arg11: memref<1x32xf32, #tpu.memory_space<vmem>>, %arg12: memref<128x32xf32, #tpu.memory_space<vmem>>, %arg13: memref<1x128xf32, #tpu.memory_space<vmem>>, %arg14: memref<1x1x128xf32, #tpu.memory_space<vmem>>) attributes {dimension_semantics = [#tpu.dimension_semantics<parallel>], iteration_bounds = array<i64: 2>, scalar_prefetch = 0 : i64, scratch_operands = 0 : i64, tpu.core_type = #tpu.core_type<tc>, window_params = [{transform_indices = @transform_0, window_bounds = array<i64: 1, 24, 32>}, {pipeline_mode = #tpu.pipeline_mode<synchronous>, transform_indices = @transform_1, window_bounds = array<i64: 16, 128>}, {pipeline_mode = #tpu.pipeline_mode<synchronous>, transform_indices = @transform_2, window_bounds = array<i64: 1, 16>}, {pipeline_mode = #tpu.pipeline_mode<synchronous>, transform_indices = @transform_3, window_bounds = array<i64: 64, 16>}, {pipeline_mode = #tpu.pipeline_mode<synchronous>, transform_indices = @transform_4, window_bounds = array<i64: 1, 16>}, {pipeline_mode = #tpu.pipeline_mode<synchronous>, transform_indices = @transform_5, window_bounds = array<i64: 48, 32>}, {pipeline_mode = #tpu.pipeline_mode<synchronous>, transform_indices = @transform_6, window_bounds = array<i64: 1, 32>}, {pipeline_mode = #tpu.pipeline_mode<synchronous>, transform_indices = @transform_7, window_bounds = array<i64: 96, 32>}, {pipeline_mode = #tpu.pipeline_mode<synchronous>, transform_indices = @transform_8, window_bounds = array<i64: 1, 32>}, {pipeline_mode = #tpu.pipeline_mode<synchronous>, transform_indices = @transform_9, window_bounds = array<i64: 64, 32>}, {pipeline_mode = #tpu.pipeline_mode<synchronous>, transform_indices = @transform_10, window_bounds = array<i64: 1, 32>}, {pipeline_mode = #tpu.pipeline_mode<synchronous>, transform_indices = @transform_11, window_bounds = array<i64: 128, 32>}, {pipeline_mode = #tpu.pipeline_mode<synchronous>, transform_indices = @transform_12, window_bounds = array<i64: 1, 128>}, {transform_indices = @transform_13, window_bounds = array<i64: 1, 1, 128>}]} {
    %c0 = arith.constant 0 : index
    %c0_0 = arith.constant 0 : index
    %c0_1 = arith.constant 0 : index
    %0 = vector.load %arg1[%c0, %c0_0, %c0_1] : memref<1x24x32xf32, #tpu.memory_space<vmem>>, vector<1x24x32xf32>
    %1 = vector.shape_cast %0 : vector<1x24x32xf32> to vector<24x32xf32>
    %2 = vector.extract_strided_slice %1 {offsets = [0, 0], sizes = [21, 32], strides = [1, 1]} : vector<24x32xf32> to vector<21x32xf32>
    %3 = vector.extract_strided_slice %1 {offsets = [1, 0], sizes = [21, 32], strides = [1, 1]} : vector<24x32xf32> to vector<21x32xf32>
    %4 = vector.extract_strided_slice %1 {offsets = [2, 0], sizes = [21, 32], strides = [1, 1]} : vector<24x32xf32> to vector<21x32xf32>
    %5 = vector.extract_strided_slice %1 {offsets = [3, 0], sizes = [21, 32], strides = [1, 1]} : vector<24x32xf32> to vector<21x32xf32>
    %6 = tpu.concatenate %2, %3, %4, %5 in 1 : vector<21x32xf32>, vector<21x32xf32>, vector<21x32xf32>, vector<21x32xf32> -> vector<21x128xf32>
    %c0_2 = arith.constant 0 : index
    %c0_3 = arith.constant 0 : index
    %7 = vector.load %arg2[%c0_2, %c0_3] : memref<16x128xf32, #tpu.memory_space<vmem>>, vector<16x128xf32>
    %cst = arith.constant dense<0.000000e+00> : vector<21x16xf32>
    %8 = tpu.matmul %6, %7, %cst {dimension_numbers = #tpu.dot_dimension_numbers<[1], [1], [0], [0], [0, 0, 1, 0], [], []>} : vector<21x128xf32>, vector<16x128xf32>, vector<21x16xf32> -> vector<21x16xf32>
    %c0_4 = arith.constant 0 : index
    %c0_5 = arith.constant 0 : index
    %9 = vector.load %arg3[%c0_4, %c0_5] : memref<1x16xf32, #tpu.memory_space<vmem>>, vector<1x16xf32>
    %10 = vector.broadcast %9 : vector<1x16xf32> to vector<21x16xf32>
    %11 = arith.addf %8, %10 : vector<21x16xf32>
    %12 = vector.extract_strided_slice %11 {offsets = [0, 0], sizes = [18, 16], strides = [1, 1]} : vector<21x16xf32> to vector<18x16xf32>
    %13 = vector.extract_strided_slice %11 {offsets = [1, 0], sizes = [18, 16], strides = [1, 1]} : vector<21x16xf32> to vector<18x16xf32>
    %14 = vector.extract_strided_slice %11 {offsets = [2, 0], sizes = [18, 16], strides = [1, 1]} : vector<21x16xf32> to vector<18x16xf32>
    %15 = vector.extract_strided_slice %11 {offsets = [3, 0], sizes = [18, 16], strides = [1, 1]} : vector<21x16xf32> to vector<18x16xf32>
    %16 = tpu.concatenate %12, %13, %14, %15 in 1 : vector<18x16xf32>, vector<18x16xf32>, vector<18x16xf32>, vector<18x16xf32> -> vector<18x64xf32>
    %c0_6 = arith.constant 0 : index
    %c0_7 = arith.constant 0 : index
    %17 = vector.load %arg4[%c0_6, %c0_7] : memref<64x16xf32, #tpu.memory_space<vmem>>, vector<64x16xf32>
    %cst_8 = arith.constant dense<0.000000e+00> : vector<18x16xf32>
    %18 = tpu.matmul %16, %17, %cst_8 {dimension_numbers = #tpu.dot_dimension_numbers<[1], [0], [0], [1], [0, 0, 1, 1], [], []>} : vector<18x64xf32>, vector<64x16xf32>, vector<18x16xf32> -> vector<18x16xf32>
    %c0_9 = arith.constant 0 : index
    %c0_10 = arith.constant 0 : index
    %19 = vector.load %arg5[%c0_9, %c0_10] : memref<1x16xf32, #tpu.memory_space<vmem>>, vector<1x16xf32>
    %20 = vector.broadcast %19 : vector<1x16xf32> to vector<18x16xf32>
    %21 = arith.addf %18, %20 : vector<18x16xf32>
    %22 = vector.extract_strided_slice %21 {offsets = [0, 0], sizes = [1, 16], strides = [1, 1]} : vector<18x16xf32> to vector<1x16xf32>
    %23 = vector.extract_strided_slice %21 {offsets = [1, 0], sizes = [1, 16], strides = [1, 1]} : vector<18x16xf32> to vector<1x16xf32>
    %24 = arith.maximumf %22, %23 : vector<1x16xf32>
    %25 = vector.extract_strided_slice %21 {offsets = [2, 0], sizes = [1, 16], strides = [1, 1]} : vector<18x16xf32> to vector<1x16xf32>
    %26 = vector.extract_strided_slice %21 {offsets = [3, 0], sizes = [1, 16], strides = [1, 1]} : vector<18x16xf32> to vector<1x16xf32>
    %27 = arith.maximumf %25, %26 : vector<1x16xf32>
    %28 = vector.extract_strided_slice %21 {offsets = [4, 0], sizes = [1, 16], strides = [1, 1]} : vector<18x16xf32> to vector<1x16xf32>
    %29 = vector.extract_strided_slice %21 {offsets = [5, 0], sizes = [1, 16], strides = [1, 1]} : vector<18x16xf32> to vector<1x16xf32>
    %30 = arith.maximumf %28, %29 : vector<1x16xf32>
    %31 = vector.extract_strided_slice %21 {offsets = [6, 0], sizes = [1, 16], strides = [1, 1]} : vector<18x16xf32> to vector<1x16xf32>
    %32 = vector.extract_strided_slice %21 {offsets = [7, 0], sizes = [1, 16], strides = [1, 1]} : vector<18x16xf32> to vector<1x16xf32>
    %33 = arith.maximumf %31, %32 : vector<1x16xf32>
    %34 = vector.extract_strided_slice %21 {offsets = [8, 0], sizes = [1, 16], strides = [1, 1]} : vector<18x16xf32> to vector<1x16xf32>
    %35 = vector.extract_strided_slice %21 {offsets = [9, 0], sizes = [1, 16], strides = [1, 1]} : vector<18x16xf32> to vector<1x16xf32>
    %36 = arith.maximumf %34, %35 : vector<1x16xf32>
    %37 = vector.extract_strided_slice %21 {offsets = [10, 0], sizes = [1, 16], strides = [1, 1]} : vector<18x16xf32> to vector<1x16xf32>
    %38 = vector.extract_strided_slice %21 {offsets = [11, 0], sizes = [1, 16], strides = [1, 1]} : vector<18x16xf32> to vector<1x16xf32>
    %39 = arith.maximumf %37, %38 : vector<1x16xf32>
    %40 = vector.extract_strided_slice %21 {offsets = [12, 0], sizes = [1, 16], strides = [1, 1]} : vector<18x16xf32> to vector<1x16xf32>
    %41 = vector.extract_strided_slice %21 {offsets = [13, 0], sizes = [1, 16], strides = [1, 1]} : vector<18x16xf32> to vector<1x16xf32>
    %42 = arith.maximumf %40, %41 : vector<1x16xf32>
    %43 = vector.extract_strided_slice %21 {offsets = [14, 0], sizes = [1, 16], strides = [1, 1]} : vector<18x16xf32> to vector<1x16xf32>
    %44 = vector.extract_strided_slice %21 {offsets = [15, 0], sizes = [1, 16], strides = [1, 1]} : vector<18x16xf32> to vector<1x16xf32>
    %45 = arith.maximumf %43, %44 : vector<1x16xf32>
    %46 = vector.extract_strided_slice %21 {offsets = [16, 0], sizes = [1, 16], strides = [1, 1]} : vector<18x16xf32> to vector<1x16xf32>
    %47 = vector.extract_strided_slice %21 {offsets = [17, 0], sizes = [1, 16], strides = [1, 1]} : vector<18x16xf32> to vector<1x16xf32>
    %48 = arith.maximumf %46, %47 : vector<1x16xf32>
    %49 = tpu.concatenate %24, %27, %30, %33, %36, %39, %42, %45, %48 in 0 : vector<1x16xf32>, vector<1x16xf32>, vector<1x16xf32>, vector<1x16xf32>, vector<1x16xf32>, vector<1x16xf32>, vector<1x16xf32>, vector<1x16xf32>, vector<1x16xf32> -> vector<9x16xf32>
    %50 = vector.extract_strided_slice %49 {offsets = [0, 0], sizes = [7, 16], strides = [1, 1]} : vector<9x16xf32> to vector<7x16xf32>
    %51 = vector.extract_strided_slice %49 {offsets = [1, 0], sizes = [7, 16], strides = [1, 1]} : vector<9x16xf32> to vector<7x16xf32>
    %52 = vector.extract_strided_slice %49 {offsets = [2, 0], sizes = [7, 16], strides = [1, 1]} : vector<9x16xf32> to vector<7x16xf32>
    %53 = tpu.concatenate %50, %51, %52 in 1 : vector<7x16xf32>, vector<7x16xf32>, vector<7x16xf32> -> vector<7x48xf32>
    %c0_11 = arith.constant 0 : index
    %c0_12 = arith.constant 0 : index
    %54 = vector.load %arg6[%c0_11, %c0_12] : memref<48x32xf32, #tpu.memory_space<vmem>>, vector<48x32xf32>
    %cst_13 = arith.constant dense<0.000000e+00> : vector<7x32xf32>
    %55 = tpu.matmul %53, %54, %cst_13 {dimension_numbers = #tpu.dot_dimension_numbers<[1], [0], [0], [1], [0, 0, 1, 1], [], []>} : vector<7x48xf32>, vector<48x32xf32>, vector<7x32xf32> -> vector<7x32xf32>
    %c0_14 = arith.constant 0 : index
    %c0_15 = arith.constant 0 : index
    %56 = vector.load %arg7[%c0_14, %c0_15] : memref<1x32xf32, #tpu.memory_space<vmem>>, vector<1x32xf32>
    %57 = vector.broadcast %56 : vector<1x32xf32> to vector<7x32xf32>
    %58 = arith.addf %55, %57 : vector<7x32xf32>
    %59 = vector.extract_strided_slice %58 {offsets = [0, 0], sizes = [5, 32], strides = [1, 1]} : vector<7x32xf32> to vector<5x32xf32>
    %60 = vector.extract_strided_slice %58 {offsets = [1, 0], sizes = [5, 32], strides = [1, 1]} : vector<7x32xf32> to vector<5x32xf32>
    %61 = vector.extract_strided_slice %58 {offsets = [2, 0], sizes = [5, 32], strides = [1, 1]} : vector<7x32xf32> to vector<5x32xf32>
    %62 = tpu.concatenate %59, %60, %61 in 1 : vector<5x32xf32>, vector<5x32xf32>, vector<5x32xf32> -> vector<5x96xf32>
    %c0_16 = arith.constant 0 : index
    %c0_17 = arith.constant 0 : index
    %63 = vector.load %arg8[%c0_16, %c0_17] : memref<96x32xf32, #tpu.memory_space<vmem>>, vector<96x32xf32>
    %cst_18 = arith.constant dense<0.000000e+00> : vector<5x32xf32>
    %64 = tpu.matmul %62, %63, %cst_18 {dimension_numbers = #tpu.dot_dimension_numbers<[1], [0], [0], [1], [0, 0, 1, 1], [], []>} : vector<5x96xf32>, vector<96x32xf32>, vector<5x32xf32> -> vector<5x32xf32>
    %c0_19 = arith.constant 0 : index
    %c0_20 = arith.constant 0 : index
    %65 = vector.load %arg9[%c0_19, %c0_20] : memref<1x32xf32, #tpu.memory_space<vmem>>, vector<1x32xf32>
    %66 = vector.broadcast %65 : vector<1x32xf32> to vector<5x32xf32>
    %67 = arith.addf %64, %66 : vector<5x32xf32>
    %68 = vector.extract_strided_slice %67 {offsets = [0, 0], sizes = [1, 32], strides = [1, 1]} : vector<5x32xf32> to vector<1x32xf32>
    %69 = vector.extract_strided_slice %67 {offsets = [1, 0], sizes = [1, 32], strides = [1, 1]} : vector<5x32xf32> to vector<1x32xf32>
    %70 = arith.maximumf %68, %69 : vector<1x32xf32>
    %71 = vector.extract_strided_slice %67 {offsets = [2, 0], sizes = [1, 32], strides = [1, 1]} : vector<5x32xf32> to vector<1x32xf32>
    %72 = vector.extract_strided_slice %67 {offsets = [3, 0], sizes = [1, 32], strides = [1, 1]} : vector<5x32xf32> to vector<1x32xf32>
    %73 = arith.maximumf %71, %72 : vector<1x32xf32>
    %74 = tpu.concatenate %70, %73 in 0 : vector<1x32xf32>, vector<1x32xf32> -> vector<2x32xf32>
    %cst_21 = arith.constant 0.00999999977 : f32
    %75 = vector.broadcast %cst_21 : f32 to vector<2x32xf32>
    %76 = arith.mulf %74, %75 : vector<2x32xf32>
    %77 = arith.maximumf %74, %76 : vector<2x32xf32>
    %78 = vector.extract_strided_slice %77 {offsets = [0, 0], sizes = [1, 32], strides = [1, 1]} : vector<2x32xf32> to vector<1x32xf32>
    %79 = vector.extract_strided_slice %77 {offsets = [1, 0], sizes = [1, 32], strides = [1, 1]} : vector<2x32xf32> to vector<1x32xf32>
    %80 = tpu.concatenate %78, %79 in 1 : vector<1x32xf32>, vector<1x32xf32> -> vector<1x64xf32>
    %c0_22 = arith.constant 0 : index
    %c0_23 = arith.constant 0 : index
    %81 = vector.load %arg10[%c0_22, %c0_23] : memref<64x32xf32, #tpu.memory_space<vmem>>, vector<64x32xf32>
    %cst_24 = arith.constant dense<0.000000e+00> : vector<1x32xf32>
    %82 = tpu.matmul %80, %81, %cst_24 {dimension_numbers = #tpu.dot_dimension_numbers<[1], [0], [0], [1], [0, 0, 1, 1], [], []>} : vector<1x64xf32>, vector<64x32xf32>, vector<1x32xf32> -> vector<1x32xf32>
    %c0_25 = arith.constant 0 : index
    %c0_26 = arith.constant 0 : index
    %83 = vector.load %arg11[%c0_25, %c0_26] : memref<1x32xf32, #tpu.memory_space<vmem>>, vector<1x32xf32>
    %84 = arith.addf %82, %83 : vector<1x32xf32>
    %c0_27 = arith.constant 0 : index
    %c0_28 = arith.constant 0 : index
    %85 = vector.load %arg12[%c0_27, %c0_28] : memref<128x32xf32, #tpu.memory_space<vmem>>, vector<128x32xf32>
    %cst_29 = arith.constant dense<0.000000e+00> : vector<1x128xf32>
    %86 = tpu.matmul %84, %85, %cst_29 {dimension_numbers = #tpu.dot_dimension_numbers<[1], [1], [0], [0], [0, 0, 1, 0], [], []>} : vector<1x32xf32>, vector<128x32xf32>, vector<1x128xf32> -> vector<1x128xf32>
    %c0_30 = arith.constant 0 : index
    %c0_31 = arith.constant 0 : index
    %87 = vector.load %arg13[%c0_30, %c0_31] : memref<1x128xf32, #tpu.memory_space<vmem>>, vector<1x128xf32>
    %88 = arith.addf %86, %87 : vector<1x128xf32>
    %c0_32 = arith.constant 0 : index
    %c0_33 = arith.constant 0 : index
    %c0_34 = arith.constant 0 : index
    %89 = vector.load %arg14[%c0_32, %c0_33, %c0_34] : memref<1x1x128xf32, #tpu.memory_space<vmem>>, vector<1x1x128xf32>
    %90 = vector.shape_cast %89 : vector<1x1x128xf32> to vector<1x128xf32>
    %91 = vector.shape_cast %88 : vector<1x128xf32> to vector<1x1x128xf32>
    tpu.vector_store %arg14[%c0_32, %c0_33, %c0_34], %91 {strides = array<i32>} : memref<1x1x128xf32, #tpu.memory_space<vmem>>, vector<1x1x128xf32>,
    return
  }
  func.func @transform_0(%arg0: i32) -> (i32, i32, i32) {
    %c0_i32 = arith.constant 0 : i32
    %c0_i32_0 = arith.constant 0 : i32
    %c0_i32_1 = arith.constant 0 : i32
    return %arg0, %c0_i32, %c0_i32_0 : i32, i32, i32
  }
  func.func @transform_1(%arg0: i32) -> (i32, i32) {
    %c0_i32 = arith.constant 0 : i32
    %c0_i32_0 = arith.constant 0 : i32
    %c0_i32_1 = arith.constant 0 : i32
    return %c0_i32, %c0_i32_0 : i32, i32
  }
  func.func @transform_2(%arg0: i32) -> (i32, i32) {
    %c0_i32 = arith.constant 0 : i32
    %c0_i32_0 = arith.constant 0 : i32
    %c0_i32_1 = arith.constant 0 : i32
    return %c0_i32, %c0_i32_0 : i32, i32
  }
  func.func @transform_3(%arg0: i32) -> (i32, i32) {
    %c0_i32 = arith.constant 0 : i32
    %c0_i32_0 = arith.constant 0 : i32
    %c0_i32_1 = arith.constant 0 : i32
    return %c0_i32, %c0_i32_0 : i32, i32
  }
  func.func @transform_4(%arg0: i32) -> (i32, i32) {
    %c0_i32 = arith.constant 0 : i32
    %c0_i32_0 = arith.constant 0 : i32
    %c0_i32_1 = arith.constant 0 : i32
    return %c0_i32, %c0_i32_0 : i32, i32
  }
  func.func @transform_5(%arg0: i32) -> (i32, i32) {
    %c0_i32 = arith.constant 0 : i32
    %c0_i32_0 = arith.constant 0 : i32
    %c0_i32_1 = arith.constant 0 : i32
    return %c0_i32, %c0_i32_0 : i32, i32
  }
  func.func @transform_6(%arg0: i32) -> (i32, i32) {
    %c0_i32 = arith.constant 0 : i32
    %c0_i32_0 = arith.constant 0 : i32
    %c0_i32_1 = arith.constant 0 : i32
    return %c0_i32, %c0_i32_0 : i32, i32
  }
  func.func @transform_7(%arg0: i32) -> (i32, i32) {
    %c0_i32 = arith.constant 0 : i32
    %c0_i32_0 = arith.constant 0 : i32
    %c0_i32_1 = arith.constant 0 : i32
    return %c0_i32, %c0_i32_0 : i32, i32
  }
  func.func @transform_8(%arg0: i32) -> (i32, i32) {
    %c0_i32 = arith.constant 0 : i32
    %c0_i32_0 = arith.constant 0 : i32
    %c0_i32_1 = arith.constant 0 : i32
    return %c0_i32, %c0_i32_0 : i32, i32
  }
  func.func @transform_9(%arg0: i32) -> (i32, i32) {
    %c0_i32 = arith.constant 0 : i32
    %c0_i32_0 = arith.constant 0 : i32
    %c0_i32_1 = arith.constant 0 : i32
    return %c0_i32, %c0_i32_0 : i32, i32
  }
  func.func @transform_10(%arg0: i32) -> (i32, i32) {
    %c0_i32 = arith.constant 0 : i32
    %c0_i32_0 = arith.constant 0 : i32
    %c0_i32_1 = arith.constant 0 : i32
    return %c0_i32, %c0_i32_0 : i32, i32
  }
  func.func @transform_11(%arg0: i32) -> (i32, i32) {
    %c0_i32 = arith.constant 0 : i32
    %c0_i32_0 = arith.constant 0 : i32
    %c0_i32_1 = arith.constant 0 : i32
    return %c0_i32, %c0_i32_0 : i32, i32
  }
  func.func @transform_12(%arg0: i32) -> (i32, i32) {
    %c0_i32 = arith.constant 0 : i32
    %c0_i32_0 = arith.constant 0 : i32
    %c0_i32_1 = arith.constant 0 : i32
    return %c0_i32, %c0_i32_0 : i32, i32
  }
  func.func @transform_13(%arg0: i32) -> (i32, i32, i32) {
    %c0_i32 = arith.constant 0 : i32
    %c0_i32_0 = arith.constant 0 : i32
    %c0_i32_1 = arith.constant 0 : i32
    return %arg0, %c0_i32, %c0_i32_0 : i32, i32, i32
  }
}

</mosaic_0001>

<llo_original>
// kernel: cnn_forward.1
$region0: #{cnn_forward.1}
  #allocation0 [shape = 'u32[]', space=smem, size = 0x4, offset = 0x4, fixed_abs, tag = 'smem constant byte address 0x4 - core index']
  #allocation1 [shape = 'u32[144,128]{1,0:T(1,128)}', space=vmem, size = 0x12000, scoped, tag = 'internal scratch']
  %s0 = inlined_call_operand.vmem [shape: f32[2,24,32], index: 0, kind: input, shape index: {}]
  %s1 = inlined_call_operand.vmem [shape: f32[16,128], index: 1, kind: input, shape index: {}]
  %s2 = inlined_call_operand.vmem [shape: f32[1,16], index: 2, kind: input, shape index: {}]
  %s3 = inlined_call_operand.vmem [shape: f32[64,16], index: 3, kind: input, shape index: {}]
  %s4 = inlined_call_operand.vmem [shape: f32[1,16], index: 4, kind: input, shape index: {}]
  %s5 = inlined_call_operand.vmem [shape: f32[48,32], index: 5, kind: input, shape index: {}]
  %s6 = inlined_call_operand.vmem [shape: f32[1,32], index: 6, kind: input, shape index: {}]
  %s7 = inlined_call_operand.vmem [shape: f32[96,32], index: 7, kind: input, shape index: {}]
  %s8 = inlined_call_operand.vmem [shape: f32[1,32], index: 8, kind: input, shape index: {}]
  %s9 = inlined_call_operand.vmem [shape: f32[64,32], index: 9, kind: input, shape index: {}]
  %s10 = inlined_call_operand.vmem [shape: f32[1,32], index: 10, kind: input, shape index: {}]
  %s11 = inlined_call_operand.vmem [shape: f32[128,32], index: 11, kind: input, shape index: {}]
  %s12 = inlined_call_operand.vmem [shape: f32[1,128], index: 12, kind: input, shape index: {}]
  %s13 = inlined_call_operand.hbm [shape: f32[2,1,128], index: 13, kind: output, shape index: {}]
  %s14 = sld [smem:[#allocation0]]
  $region85: #{cnn_forward.1} parent=0
    _
  %s16 = ssub.s32 1, %s14
  %s17 = scalar_select 0, %s16, %s14
  $region1: #{cnn_forward.1} parent=0
    #allocation2 [shape = 'u8[1024]{0}', space=vmem, size = 0x400, scoped, tag = 'output window, operand 0']
    #allocation3 [shape = 's32[2]{0}', space=sflag, size = 0x8, scoped, tag = 'scoped memory for cnn_forward.1']
    %18 = vsyncpa [#allocation3], 0
    %s19 = scalar_lea.sflag [#allocation3], 1
    %20 = vsyncpa %s19, 0
    loop: start=0, step=1, limit=4
    $region2: #{cnn_forward.1} parent=1 // loop_pre_header
      _
    $region3: #{cnn_forward.1} parent=1 // loop_header
      %s22 = sphi 0, %s26
      %p23 = scmp.ge.s32.totalorder %s22, 4
      %s32 = sphi 0, %s34
      %s35 = sphi 0, %s32
      %s36 = sphi 0, %s35
      %s52 = sphi 0, %s36
      %s56 = sphi 0, %s56
      %s58 = sphi 0, %s56
      %s59 = sphi 0, %s58
      %s73 = sphi 0, %s59
      %s77 = sphi 0, %s77
      %s79 = sphi 0, %s77
      %s80 = sphi 0, %s79
      %s94 = sphi 0, %s80
      %s98 = sphi 0, %s98
      %s100 = sphi 0, %s98
      %s101 = sphi 0, %s100
      %s115 = sphi 0, %s101
      %s119 = sphi 0, %s119
      %s121 = sphi 0, %s119
      %s122 = sphi 0, %s121
      %s136 = sphi 0, %s122
      %s140 = sphi 0, %s140
      %s142 = sphi 0, %s140
      %s143 = sphi 0, %s142
      %s157 = sphi 0, %s143
      %s161 = sphi 0, %s161
      %s163 = sphi 0, %s161
      %s164 = sphi 0, %s163
      %s178 = sphi 0, %s164
      %s182 = sphi 0, %s182
      %s184 = sphi 0, %s182
      %s185 = sphi 0, %s184
      %s199 = sphi 0, %s185
      %s203 = sphi 0, %s203
      %s205 = sphi 0, %s203
      %s206 = sphi 0, %s205
      %s220 = sphi 0, %s206
      %s224 = sphi 0, %s224
      %s226 = sphi 0, %s224
      %s227 = sphi 0, %s226
      %s241 = sphi 0, %s227
      %s245 = sphi 0, %s245
      %s247 = sphi 0, %s245
      %s248 = sphi 0, %s247
      %s262 = sphi 0, %s248
      %s266 = sphi 0, %s266
      %s268 = sphi 0, %s266
      %s269 = sphi 0, %s268
      %s283 = sphi 0, %s269
      %s287 = sphi 0, %s287
      %s289 = sphi 0, %s287
      %s290 = sphi 0, %s289
      %s304 = sphi 0, %s290
      %s310 = sphi 0, %s312
      %s313 = sphi 0, %s310
      %s314 = sphi 0, %s313
      %s330 = sphi 0, %s314
    $region4: #{cnn_forward.1} parent=1 // loop_header_branch
      %25 = sbr.rel (%p23) target = $region8
    $region5: #{cnn_forward.1} parent=1 // loop_body
      %s27 = ssub.s32 %s22, 1
      %s28 = ssub.s32 %s22, 2
      %s29 = sadd.s32 %s22, 1
      %s30 = ssub.s32 %s22, %s29
      %p31 = scmp.eq.s32.totalorder %s30, 0
      %s33 = sadd.s32 %s32, 1
      %s34 = scalar_select %p31, %s32, %s33
      %p37 = pneg %p31
      %p38 = scmp.eq.s32.totalorder %s22, 1
      %p39 = por %p37, %p38
      %p40 = scmp.ne.s32.totalorder %s32, %s35
      %p41 = scmp.eq.s32.totalorder %s22, 0
      %p42 = por %p40, %p41
      %p43 = scmp.ne.s32.totalorder %s32, %s35
      %p44 = scmp.eq.s32.totalorder %s27, 1
      %p45 = por %p43, %p44
      %p46 = scmp.ne.s32.totalorder %s35, %s36
      %p47 = scmp.eq.s32.totalorder %s27, 0
      %p48 = por %p46, %p47
      %p49 = scmp.ne.s32.totalorder %s35, %s36
      %p50 = scmp.eq.s32.totalorder %s28, 1
      %p51 = por %p49, %p50
      %p53 = scmp.ne.s32.totalorder %s36, %s52
      %p54 = scmp.eq.s32.totalorder %s28, 0
      %p55 = por %p53, %p54
      %s57 = sadd.s32 %s56, 1
      %p60 = scmp.eq.s32.totalorder %s22, 1
      %p61 = scmp.ne.s32.totalorder %s56, %s58
      %p62 = scmp.eq.s32.totalorder %s22, 0
      %p63 = por %p61, %p62
      %p64 = scmp.ne.s32.totalorder %s56, %s58
      %p65 = scmp.eq.s32.totalorder %s27, 1
      %p66 = por %p64, %p65
      %p67 = scmp.ne.s32.totalorder %s58, %s59
      %p68 = scmp.eq.s32.totalorder %s27, 0
      %p69 = por %p67, %p68
      %p70 = scmp.ne.s32.totalorder %s58, %s59
      %p71 = scmp.eq.s32.totalorder %s28, 1
      %p72 = por %p70, %p71
      %p74 = scmp.ne.s32.totalorder %s59, %s73
      %p75 = scmp.eq.s32.totalorder %s28, 0
      %p76 = por %p74, %p75
      %s78 = sadd.s32 %s77, 1
      %p81 = scmp.eq.s32.totalorder %s22, 1
      %p82 = scmp.ne.s32.totalorder %s77, %s79
      %p83 = scmp.eq.s32.totalorder %s22, 0
      %p84 = por %p82, %p83
      %p85 = scmp.ne.s32.totalorder %s77, %s79
      %p86 = scmp.eq.s32.totalorder %s27, 1
      %p87 = por %p85, %p86
      %p88 = scmp.ne.s32.totalorder %s79, %s80
      %p89 = scmp.eq.s32.totalorder %s27, 0
      %p90 = por %p88, %p89
      %p91 = scmp.ne.s32.totalorder %s79, %s80
      %p92 = scmp.eq.s32.totalorder %s28, 1
      %p93 = por %p91, %p92
      %p95 = scmp.ne.s32.totalorder %s80, %s94
      %p96 = scmp.eq.s32.totalorder %s28, 0
      %p97 = por %p95, %p96
      %s99 = sadd.s32 %s98, 1
      %p102 = scmp.eq.s32.totalorder %s22, 1
      %p103 = scmp.ne.s32.totalorder %s98, %s100
      %p104 = scmp.eq.s32.totalorder %s22, 0
      %p105 = por %p103, %p104
      %p106 = scmp.ne.s32.totalorder %s98, %s100
      %p107 = scmp.eq.s32.totalorder %s27, 1
      %p108 = por %p106, %p107
      %p109 = scmp.ne.s32.totalorder %s100, %s101
      %p110 = scmp.eq.s32.totalorder %s27, 0
      %p111 = por %p109, %p110
      %p112 = scmp.ne.s32.totalorder %s100, %s101
      %p113 = scmp.eq.s32.totalorder %s28, 1
      %p114 = por %p112, %p113
      %p116 = scmp.ne.s32.totalorder %s101, %s115
      %p117 = scmp.eq.s32.totalorder %s28, 0
      %p118 = por %p116, %p117
      %s120 = sadd.s32 %s119, 1
      %p123 = scmp.eq.s32.totalorder %s22, 1
      %p124 = scmp.ne.s32.totalorder %s119, %s121
      %p125 = scmp.eq.s32.totalorder %s22, 0
      %p126 = por %p124, %p125
      %p127 = scmp.ne.s32.totalorder %s119, %s121
      %p128 = scmp.eq.s32.totalorder %s27, 1
      %p129 = por %p127, %p128
      %p130 = scmp.ne.s32.totalorder %s121, %s122
      %p131 = scmp.eq.s32.totalorder %s27, 0
      %p132 = por %p130, %p131
      %p133 = scmp.ne.s32.totalorder %s121, %s122
      %p134 = scmp.eq.s32.totalorder %s28, 1
      %p135 = por %p133, %p134
      %p137 = scmp.ne.s32.totalorder %s122, %s136
      %p138 = scmp.eq.s32.totalorder %s28, 0
      %p139 = por %p137, %p138
      %s141 = sadd.s32 %s140, 1
      %p144 = scmp.eq.s32.totalorder %s22, 1
      %p145 = scmp.ne.s32.totalorder %s140, %s142
      %p146 = scmp.eq.s32.totalorder %s22, 0
      %p147 = por %p145, %p146
      %p148 = scmp.ne.s32.totalorder %s140, %s142
      %p149 = scmp.eq.s32.totalorder %s27, 1
      %p150 = por %p148, %p149
      %p151 = scmp.ne.s32.totalorder %s142, %s143
      %p152 = scmp.eq.s32.totalorder %s27, 0
      %p153 = por %p151, %p152
      %p154 = scmp.ne.s32.totalorder %s142, %s143
      %p155 = scmp.eq.s32.totalorder %s28, 1
      %p156 = por %p154, %p155
      %p158 = scmp.ne.s32.totalorder %s143, %s157
      %p159 = scmp.eq.s32.totalorder %s28, 0
      %p160 = por %p158, %p159
      %s162 = sadd.s32 %s161, 1
      %p165 = scmp.eq.s32.totalorder %s22, 1
      %p166 = scmp.ne.s32.totalorder %s161, %s163
      %p167 = scmp.eq.s32.totalorder %s22, 0
      %p168 = por %p166, %p167
      %p169 = scmp.ne.s32.totalorder %s161, %s163
      %p170 = scmp.eq.s32.totalorder %s27, 1
      %p171 = por %p169, %p170
      %p172 = scmp.ne.s32.totalorder %s163, %s164
      %p173 = scmp.eq.s32.totalorder %s27, 0
      %p174 = por %p172, %p173
      %p175 = scmp.ne.s32.totalorder %s163, %s164
      %p176 = scmp.eq.s32.totalorder %s28, 1
      %p177 = por %p175, %p176
      %p179 = scmp.ne.s32.totalorder %s164, %s178
      %p180 = scmp.eq.s32.totalorder %s28, 0
      %p181 = por %p179, %p180
      %s183 = sadd.s32 %s182, 1
      %p186 = scmp.eq.s32.totalorder %s22, 1
      %p187 = scmp.ne.s32.totalorder %s182, %s184
      %p188 = scmp.eq.s32.totalorder %s22, 0
      %p189 = por %p187, %p188
      %p190 = scmp.ne.s32.totalorder %s182, %s184
      %p191 = scmp.eq.s32.totalorder %s27, 1
      %p192 = por %p190, %p191
      %p193 = scmp.ne.s32.totalorder %s184, %s185
      %p194 = scmp.eq.s32.totalorder %s27, 0
      %p195 = por %p193, %p194
      %p196 = scmp.ne.s32.totalorder %s184, %s185
      %p197 = scmp.eq.s32.totalorder %s28, 1
      %p198 = por %p196, %p197
      %p200 = scmp.ne.s32.totalorder %s185, %s199
      %p201 = scmp.eq.s32.totalorder %s28, 0
      %p202 = por %p200, %p201
      %s204 = sadd.s32 %s203, 1
      %p207 = scmp.eq.s32.totalorder %s22, 1
      %p208 = scmp.ne.s32.totalorder %s203, %s205
      %p209 = scmp.eq.s32.totalorder %s22, 0
      %p210 = por %p208, %p209
      %p211 = scmp.ne.s32.totalorder %s203, %s205
      %p212 = scmp.eq.s32.totalorder %s27, 1
      %p213 = por %p211, %p212
      %p214 = scmp.ne.s32.totalorder %s205, %s206
      %p215 = scmp.eq.s32.totalorder %s27, 0
      %p216 = por %p214, %p215
      %p217 = scmp.ne.s32.totalorder %s205, %s206
      %p218 = scmp.eq.s32.totalorder %s28, 1
      %p219 = por %p217, %p218
      %p221 = scmp.ne.s32.totalorder %s206, %s220
      %p222 = scmp.eq.s32.totalorder %s28, 0
      %p223 = por %p221, %p222
      %s225 = sadd.s32 %s224, 1
      %p228 = scmp.eq.s32.totalorder %s22, 1
      %p229 = scmp.ne.s32.totalorder %s224, %s226
      %p230 = scmp.eq.s32.totalorder %s22, 0
      %p231 = por %p229, %p230
      %p232 = scmp.ne.s32.totalorder %s224, %s226
      %p233 = scmp.eq.s32.totalorder %s27, 1
      %p234 = por %p232, %p233
      %p235 = scmp.ne.s32.totalorder %s226, %s227
      %p236 = scmp.eq.s32.totalorder %s27, 0
      %p237 = por %p235, %p236
      %p238 = scmp.ne.s32.totalorder %s226, %s227
      %p239 = scmp.eq.s32.totalorder %s28, 1
      %p240 = por %p238, %p239
      %p242 = scmp.ne.s32.totalorder %s227, %s241
      %p243 = scmp.eq.s32.totalorder %s28, 0
      %p244 = por %p242, %p243
      %s246 = sadd.s32 %s245, 1
      %p249 = scmp.eq.s32.totalorder %s22, 1
      %p250 = scmp.ne.s32.totalorder %s245, %s247
      %p251 = scmp.eq.s32.totalorder %s22, 0
      %p252 = por %p250, %p251
      %p253 = scmp.ne.s32.totalorder %s245, %s247
      %p254 = scmp.eq.s32.totalorder %s27, 1
      %p255 = por %p253, %p254
      %p256 = scmp.ne.s32.totalorder %s247, %s248
      %p257 = scmp.eq.s32.totalorder %s27, 0
      %p258 = por %p256, %p257
      %p259 = scmp.ne.s32.totalorder %s247, %s248
      %p260 = scmp.eq.s32.totalorder %s28, 1
      %p261 = por %p259, %p260
      %p263 = scmp.ne.s32.totalorder %s248, %s262
      %p264 = scmp.eq.s32.totalorder %s28, 0
      %p265 = por %p263, %p264
      %s267 = sadd.s32 %s266, 1
      %p270 = scmp.eq.s32.totalorder %s22, 1
      %p271 = scmp.ne.s32.totalorder %s266, %s268
      %p272 = scmp.eq.s32.totalorder %s22, 0
      %p273 = por %p271, %p272
      %p274 = scmp.ne.s32.totalorder %s266, %s268
      %p275 = scmp.eq.s32.totalorder %s27, 1
      %p276 = por %p274, %p275
      %p277 = scmp.ne.s32.totalorder %s268, %s269
      %p278 = scmp.eq.s32.totalorder %s27, 0
      %p279 = por %p277, %p278
      %p280 = scmp.ne.s32.totalorder %s268, %s269
      %p281 = scmp.eq.s32.totalorder %s28, 1
      %p282 = por %p280, %p281
      %p284 = scmp.ne.s32.totalorder %s269, %s283
      %p285 = scmp.eq.s32.totalorder %s28, 0
      %p286 = por %p284, %p285
      %s288 = sadd.s32 %s287, 1
      %p291 = scmp.eq.s32.totalorder %s22, 1
      %p292 = scmp.ne.s32.totalorder %s287, %s289
      %p293 = scmp.eq.s32.totalorder %s22, 0
      %p294 = por %p292, %p293
      %p295 = scmp.ne.s32.totalorder %s287, %s289
      %p296 = scmp.eq.s32.totalorder %s27, 1
      %p297 = por %p295, %p296
      %p298 = scmp.ne.s32.totalorder %s289, %s290
      %p299 = scmp.eq.s32.totalorder %s27, 0
      %p300 = por %p298, %p299
      %p301 = scmp.ne.s32.totalorder %s289, %s290
      %p302 = scmp.eq.s32.totalorder %s28, 1
      %p303 = por %p301, %p302
      %p305 = scmp.ne.s32.totalorder %s290, %s304
      %p306 = scmp.eq.s32.totalorder %s28, 0
      %p307 = por %p305, %p306
      %s308 = ssub.s32 %s22, %s29
      %p309 = scmp.eq.s32.totalorder %s308, 0
      %s311 = sadd.s32 %s310, 1
      %s312 = scalar_select %p309, %s310, %s311
      %p315 = pneg %p309
      %p316 = scmp.eq.s32.totalorder %s22, 1
      %p317 = por %p315, %p316
      %p318 = scmp.ne.s32.totalorder %s310, %s313
      %p319 = scmp.eq.s32.totalorder %s22, 0
      %p320 = por %p318, %p319
      %p321 = scmp.ne.s32.totalorder %s310, %s313
      %p322 = scmp.eq.s32.totalorder %s27, 1
      %p323 = por %p321, %p322
      %p324 = scmp.ne.s32.totalorder %s313, %s314
      %p325 = scmp.eq.s32.totalorder %s27, 0
      %p326 = por %p324, %p325
      %p327 = scmp.ne.s32.totalorder %s313, %s314
      %p328 = scmp.eq.s32.totalorder %s28, 1
      %p329 = por %p327, %p328
      %p331 = scmp.ne.s32.totalorder %s314, %s330
      %p332 = scmp.eq.s32.totalorder %s28, 0
      %p333 = por %p331, %p332
      %p334 = scmp.le.s32.totalorder 1, %s22
      %p335 = scmp.lt.s32.totalorder %s22, 3
      %p336 = pnand %p334, %p335
      %p337 = pneg %p336
      // Predicated region
      $region9: #{cnn_forward.1} parent=5 // pred_check
        _
      $region10: #{cnn_forward.1} parent=5 // pred_check_branch
        %339 = sbr.rel (%p336) target = $region12
      $region11: #{cnn_forward.1} parent=5 // pred_region
        %s340 = ssub.s32 %s22, 1
        // Predicated region
        $region13: #{cnn_forward.1} parent=11 // pred_check
          %p341 = pneg %p69
        $region14: #{cnn_forward.1} parent=11 // pred_check_branch
          %343 = sbr.rel (%p341) target = $region16
        $region15: #{cnn_forward.1} parent=11 // pred_region
          _
        $region16: #{cnn_forward.1} parent=11 // pred_fallthru
          _
        // Predicated region
        $region17: #{cnn_forward.1} parent=11 // pred_check
          %p344 = pneg %p90
        $region18: #{cnn_forward.1} parent=11 // pred_check_branch
          %346 = sbr.rel (%p344) target = $region20
        $region19: #{cnn_forward.1} parent=11 // pred_region
          _
        $region20: #{cnn_forward.1} parent=11 // pred_fallthru
          _
        // Predicated region
        $region21: #{cnn_forward.1} parent=11 // pred_check
          %p347 = pneg %p111
        $region22: #{cnn_forward.1} parent=11 // pred_check_branch
          %349 = sbr.rel (%p347) target = $region24
        $region23: #{cnn_forward.1} parent=11 // pred_region
          _
        $region24: #{cnn_forward.1} parent=11 // pred_fallthru
          _
        // Predicated region
        $region25: #{cnn_forward.1} parent=11 // pred_check
          %p350 = pneg %p132
        $region26: #{cnn_forward.1} parent=11 // pred_check_branch
          %352 = sbr.rel (%p350) target = $region28
        $region27: #{cnn_forward.1} parent=11 // pred_region
          _
        $region28: #{cnn_forward.1} parent=11 // pred_fallthru
          _
        // Predicated region
        $region29: #{cnn_forward.1} parent=11 // pred_check
          %p353 = pneg %p153
        $region30: #{cnn_forward.1} parent=11 // pred_check_branch
          %355 = sbr.rel (%p353) target = $region32
        $region31: #{cnn_forward.1} parent=11 // pred_region
          _
        $region32: #{cnn_forward.1} parent=11 // pred_fallthru
          _
        // Predicated region
        $region33: #{cnn_forward.1} parent=11 // pred_check
          %p356 = pneg %p174
        $region34: #{cnn_forward.1} parent=11 // pred_check_branch
          %358 = sbr.rel (%p356) target = $region36
        $region35: #{cnn_forward.1} parent=11 // pred_region
          _
        $region36: #{cnn_forward.1} parent=11 // pred_fallthru
          _
        // Predicated region
        $region37: #{cnn_forward.1} parent=11 // pred_check
          %p359 = pneg %p195
        $region38: #{cnn_forward.1} parent=11 // pred_check_branch
          %361 = sbr.rel (%p359) target = $region40
        $region39: #{cnn_forward.1} parent=11 // pred_region
          _
        $region40: #{cnn_forward.1} parent=11 // pred_fallthru
          _
        // Predicated region
        $region41: #{cnn_forward.1} parent=11 // pred_check
          %p362 = pneg %p216
        $region42: #{cnn_forward.1} parent=11 // pred_check_branch
          %364 = sbr.rel (%p362) target = $region44
        $region43: #{cnn_forward.1} parent=11 // pred_region
          _
        $region44: #{cnn_forward.1} parent=11 // pred_fallthru
          _
        // Predicated region
        $region45: #{cnn_forward.1} parent=11 // pred_check
          %p365 = pneg %p237
        $region46: #{cnn_forward.1} parent=11 // pred_check_branch
          %367 = sbr.rel (%p365) target = $region48
        $region47: #{cnn_forward.1} parent=11 // pred_region
          _
        $region48: #{cnn_forward.1} parent=11 // pred_fallthru
          _
        // Predicated region
        $region49: #{cnn_forward.1} parent=11 // pred_check
          %p368 = pneg %p258
        $region50: #{cnn_forward.1} parent=11 // pred_check_branch
          %370 = sbr.rel (%p368) target = $region52
        $region51: #{cnn_forward.1} parent=11 // pred_region
          _
        $region52: #{cnn_forward.1} parent=11 // pred_fallthru
          _
        // Predicated region
        $region53: #{cnn_forward.1} parent=11 // pred_check
          %p371 = pneg %p279
        $region54: #{cnn_forward.1} parent=11 // pred_check_branch
          %373 = sbr.rel (%p371) target = $region56
        $region55: #{cnn_forward.1} parent=11 // pred_region
          _
        $region56: #{cnn_forward.1} parent=11 // pred_fallthru
          _
        // Predicated region
        $region57: #{cnn_forward.1} parent=11 // pred_check
          %p374 = pneg %p300
        $region58: #{cnn_forward.1} parent=11 // pred_check_branch
          %376 = sbr.rel (%p374) target = $region60
        $region59: #{cnn_forward.1} parent=11 // pred_region
          _
        $region60: #{cnn_forward.1} parent=11 // pred_fallthru
          _
      $region12: #{cnn_forward.1} parent=5 // pred_fallthru
        _
      %p377 = scmp.lt.s32.totalorder %s22, 2
      // Predicated region
      $region61: #{cnn_forward.1} parent=5 // pred_check
        %p378 = pneg %p377
      $region62: #{cnn_forward.1} parent=5 // pred_check_branch
        %380 = sbr.rel (%p378) target = $region64
      $region63: #{cnn_forward.1} parent=5 // pred_region
        // Predicated region
        $region65: #{cnn_forward.1} parent=63 // pred_check
          %p381 = pneg %p42
        $region66: #{cnn_forward.1} parent=63 // pred_check_branch
          %383 = sbr.rel (%p381) target = $region68
        $region67: #{cnn_forward.1} parent=63 // pred_region
          %p384 = scmp.lt.s32.totalorder %s22, 1
          %s385 = scalar_select %p384, %s22, 1
          %s386 = smul.addr %s385, 3
          %s387 = smul.addr %s386, 8
          %s388 = scalar_lea.vmem %s0, %s387
        $region68: #{cnn_forward.1} parent=63 // pred_fallthru
          _
      $region64: #{cnn_forward.1} parent=5 // pred_fallthru
        _
      %p389 = scmp.le.s32.totalorder 1, %s22
      %p390 = scmp.lt.s32.totalorder %s22, 3
      %p391 = pnand %p389, %p390
      %p392 = pneg %p391
      // Predicated region
      $region69: #{cnn_forward.1} parent=5 // pred_check
        _
      $region70: #{cnn_forward.1} parent=5 // pred_check_branch
        %394 = sbr.rel (%p391) target = $region72
      $region71: #{cnn_forward.1} parent=5 // pred_region
        %s395 = ssub.s32 %s22, 1
        %p396 = scmp.lt.s32.totalorder %s27, 1
        %s397 = scalar_select %p396, %s27, 1
        %s398 = smul.addr %s397, 3
        %s399 = smul.addr %s398, 8
        %s400 = scalar_lea.vmem %s0, %s399
        %p401 = pneg %p48
        %p402 = pneg %p45
        %p403 = pneg %p69
        %p404 = pneg %p66
        %p405 = pneg %p90
        %p406 = pneg %p87
        %p407 = pneg %p111
        %p408 = pneg %p108
        %p409 = pneg %p132
        %p410 = pneg %p129
        %p411 = pneg %p153
        %p412 = pneg %p150
        %p413 = pneg %p174
        %p414 = pneg %p171
        %p415 = pneg %p195
        %p416 = pneg %p192
        %p417 = pneg %p216
        %p418 = pneg %p213
        %p419 = pneg %p237
        %p420 = pneg %p234
        %p421 = pneg %p258
        %p422 = pneg %p255
        %p423 = pneg %p279
        %p424 = pneg %p276
        %p425 = pneg %p300
        %p426 = pneg %p297
        %p427 = pneg %p326
        %p428 = pneg %p323
        %s429 = sand.u32 %s313, 1
        %s430 = scalar_lea.sflag [#allocation3], %s429
        %s431 = sand.u32 %s313, 1
        %s432 = scalar_lea.vmem [#allocation2], %s431
        %p433 = scmp.lt.s32.totalorder %s27, 1
        %s434 = scalar_select %p433, %s27, 1
        %s435 = smul.addr %s434, 3
        %s436 = smul.addr %s435, 8
        %s437 = scalar_lea.vmem %s0, %s436
        %v438 = vld [vmem:[%s437] sm:$0xff]
        %v439 = vld [vmem:[%s437 + $0x8] sm:$0xff]
        %v440 = vld [vmem:[%s437 + $0x10] sm:$0xff]
        %vm444 = vcmask 1046528
        %v445 = vrot.slane %v438, 1
        %v446 = vrot.slane %v439, 1
        %v447 = vsel %vm444, %v445, %v446
        %v448 = vrot.slane %v440, 1
        %v449 = vsel %vm444, %v446, %v448
        %450 = vrot.lane.b32.xlu0 %v447, 32
        %v451 = vpop.permute.xlu0 %450
        %452 = vrot.lane.b32.xlu0 %v449, 32
        %v453 = vpop.permute.xlu0 %452
        %454 = vrot.lane.b32.xlu0 %v448, 32
        %v455 = vpop.permute.xlu0 %454
        %vm459 = vcmask 1045504
        %v460 = vrot.slane %v438, 2
        %v461 = vrot.slane %v439, 2
        %v462 = vsel %vm459, %v460, %v461
        %v463 = vrot.slane %v440, 2
        %v464 = vsel %vm459, %v461, %v463
        %465 = vrot.lane.b32.xlu0 %v462, 64
        %v466 = vpop.permute.xlu0 %465
        %467 = vrot.lane.b32.xlu0 %v464, 64
        %v468 = vpop.permute.xlu0 %467
        %469 = vrot.lane.b32.xlu0 %v463, 64
        %v470 = vpop.permute.xlu0 %469
        %vm474 = vcmask 1044480
        %v475 = vrot.slane %v438, 3
        %v476 = vrot.slane %v439, 3
        %v477 = vsel %vm474, %v475, %v476
        %v478 = vrot.slane %v440, 3
        %v479 = vsel %vm474, %v476, %v478
        %480 = vrot.lane.b32.xlu0 %v477, 96
        %v481 = vpop.permute.xlu0 %480
        %482 = vrot.lane.b32.xlu0 %v479, 96
        %v483 = vpop.permute.xlu0 %482
        %484 = vrot.lane.b32.xlu0 %v478, 96
        %v485 = vpop.permute.xlu0 %484
        %vm489 = vcmask 261120
        %v490 = vsel %vm489, %v438, %v451
        %v491 = vsel %vm489, %v439, %v453
        %v492 = vsel %vm489, %v440, %v455
        %vm493 = vcmask 523264
        %v494 = vsel %vm493, %v490, %v466
        %v495 = vsel %vm493, %v491, %v468
        %v496 = vsel %vm493, %v492, %v470
        %vm497 = vcmask 785408
        %v498 = vsel %vm497, %v494, %v481
        %v499 = vsel %vm497, %v495, %v483
        %v500 = vsel %vm497, %v496, %v485
        %v501 = vld [vmem:[%s1] sm:$0xff]
        %v502 = vld [vmem:[%s1 + $0x8] sm:$0xff]
        %v503 = vld [vmem:[%s2] sm:$0x1]
        %v505 = vlaneseq
        %v506 = vshrl.u32 %v505, 7
        %v507 = vsub.s32 0, %v506
        %v508 = vrot.slane %v503, %v507
        %510 = vmatprep.subr.mxu0 0.0
        %511 = vmatpush1.xpose.msra.mxu0 %v501
        %512 = vmatprep.subr.mxu0 0.0
        %513 = vmatpush1.xpose.msra.mxu0 %v502
        %514 = vmatprep.subr.mxu0 0.0
        %515 = vmatpush1.xpose.msra.mxu0 0.0
        %516 = vmatprep.subr.mxu0 0.0
        %517 = vmatpush1.xpose.msra.mxu0 0.0
        %518 = vmatprep.subr.mxu0 0.0
        %519 = vmatpush1.xpose.msra.mxu0 0.0
        %520 = vmatprep.subr.mxu0 0.0
        %521 = vmatpush1.xpose.msra.mxu0 0.0
        %522 = vmatprep.subr.mxu0 0.0
        %523 = vmatpush1.xpose.msra.mxu0 0.0
        %524 = vmatprep.subr.mxu0 0.0
        %525 = vmatpush1.xpose.msra.mxu0 0.0
        %526 = vmatprep.subr.mxu0 0.0
        %527 = vmatpush1.xpose.msra.mxu0 0.0
        %528 = vmatprep.subr.mxu0 0.0
        %529 = vmatpush1.xpose.msra.mxu0 0.0
        %530 = vmatprep.subr.mxu0 0.0
        %531 = vmatpush1.xpose.msra.mxu0 0.0
        %532 = vmatprep.subr.mxu0 0.0
        %533 = vmatpush1.xpose.msra.mxu0 0.0
        %534 = vmatprep.subr.mxu0 0.0
        %535 = vmatpush1.xpose.msra.mxu0 0.0
        %536 = vmatprep.subr.mxu0 0.0
        %537 = vmatpush1.xpose.msra.mxu0 0.0
        %538 = vmatprep.subr.mxu0 0.0
        %539 = vmatpush1.xpose.msra.mxu0 0.0
        %540 = vmatprep.subr.mxu0 0.0
        %541 = vmatpush1.xpose.msra.mxu0 0.0
        %542 = vmatprep.subr.mxu0 0.0
        %543 = vmatpush1.xpose.msra.mxu0 0.0
        %544 = vmatprep.subr.mxu0 0.0
        %545 = vmatpush1.xpose.msra.mxu0 0.0
        %546 = vmatprep.subr.mxu0 0.0
        %547 = vmatpush1.xpose.msra.mxu0 0.0
        %548 = vmatprep.subr.mxu0 0.0
        %549 = vmatpush1.xpose.msra.mxu0 0.0
        %550 = vmatprep.subr.mxu0 0.0
        %551 = vmatpush1.xpose.msra.mxu0 0.0
        %552 = vmatprep.subr.mxu0 0.0
        %553 = vmatpush1.xpose.msra.mxu0 0.0
        %554 = vmatprep.subr.mxu0 0.0
        %555 = vmatpush1.xpose.msra.mxu0 0.0
        %556 = vmatprep.subr.mxu0 0.0
        %557 = vmatpush1.xpose.msra.mxu0 0.0
        %558 = vmatprep.subr.mxu0 0.0
        %559 = vmatpush1.xpose.msra.mxu0 0.0
        %560 = vmatprep.subr.mxu0 0.0
        %561 = vmatpush1.xpose.msra.mxu0 0.0
        %562 = vmatprep.subr.mxu0 0.0
        %563 = vmatpush1.xpose.msra.mxu0 0.0
        %564 = vmatprep.subr.mxu0 0.0
        %565 = vmatpush1.xpose.msra.mxu0 0.0
        %566 = vmatprep.subr.mxu0 0.0
        %567 = vmatpush1.xpose.msra.mxu0 0.0
        %568 = vmatprep.subr.mxu0 0.0
        %569 = vmatpush1.xpose.msra.mxu0 0.0
        %570 = vmatprep.subr.mxu0 0.0
        %571 = vmatpush1.xpose.msra.mxu0 0.0
        %572 = vmatprep.subr.mxu0 0.0
        %573 = vmatpush1.xpose.msra.mxu0 0.0
        %574 = vmatprep.mubr.f32.mxu0 0.0
        %575 = vmatmul.mubr.f32.gmra.mrb[0].mxu0 %v498
        %v576 = vpop.f32.mrb[0].mxu0
        %v577 = vadd.f32 %v508, %v576
        %v578 = vpop.f32.mrb[0].mxu0
        %579 = vmatprep.mubr.f32.mxu0 0.0
        %580 = vmatmul.mubr.f32.gmra.mrb[0].mxu0 %v499
        %v581 = vpop.f32.mrb[0].mxu0
        %v582 = vadd.f32 %v508, %v581
        %v583 = vpop.f32.mrb[0].mxu0
        %584 = vmatprep.mubr.f32.mxu0 0.0
        %585 = vmatmul.mubr.f32.gmra.mrb[0].mxu0 %v500
        %v586 = vpop.f32.mrb[0].mxu0
        %v587 = vadd.f32 %v508, %v586
        %v588 = vpop.f32.mrb[0].mxu0
        %589 = vdwg.mxu0
        %v593 = vrot.slane %v577, 1
        %v594 = vrot.slane %v582, 1
        %v595 = vsel %vm444, %v593, %v594
        %v596 = vrot.slane %v587, 1
        %v597 = vsel %vm444, %v594, %v596
        %598 = vrot.lane.b32.xlu0 %v595, 16
        %v599 = vpop.permute.xlu0 %598
        %600 = vrot.lane.b32.xlu0 %v597, 16
        %v601 = vpop.permute.xlu0 %600
        %602 = vrot.lane.b32.xlu0 %v596, 16
        %v603 = vpop.permute.xlu0 %602
        %v607 = vrot.slane %v577, 2
        %v608 = vrot.slane %v582, 2
        %v609 = vsel %vm459, %v607, %v608
        %v610 = vrot.slane %v587, 2
        %v611 = vsel %vm459, %v608, %v610
        %612 = vrot.lane.b32.xlu0 %v609, 32
        %v613 = vpop.permute.xlu0 %612
        %614 = vrot.lane.b32.xlu0 %v611, 32
        %v615 = vpop.permute.xlu0 %614
        %616 = vrot.lane.b32.xlu0 %v610, 32
        %v617 = vpop.permute.xlu0 %616
        %v621 = vrot.slane %v577, 3
        %v622 = vrot.slane %v582, 3
        %v623 = vsel %vm474, %v621, %v622
        %v624 = vrot.slane %v587, 3
        %v625 = vsel %vm474, %v622, %v624
        %626 = vrot.lane.b32.xlu0 %v623, 48
        %v627 = vpop.permute.xlu0 %626
        %628 = vrot.lane.b32.xlu0 %v625, 48
        %v629 = vpop.permute.xlu0 %628
        %630 = vrot.lane.b32.xlu0 %v624, 48
        %v631 = vpop.permute.xlu0 %630
        %vm635 = vcmask 130048
        %v636 = vsel %vm635, %v577, %v599
        %v637 = vsel %vm635, %v582, %v601
        %v638 = vsel %vm635, %v587, %v603
        %v639 = vsel %vm489, %v636, %v613
        %v640 = vsel %vm489, %v637, %v615
        %v641 = vsel %vm489, %v638, %v617
        %vm642 = vcmask 392192
        %v643 = vsel %vm642, %v639, %v627
        %v644 = vsel %vm642, %v640, %v629
        %v645 = vsel %vm642, %v641, %v631
        %v646 = vld [vmem:[%s3] sm:$0xff]
        %v647 = vld [vmem:[%s3 + $0x8] sm:$0xff]
        %v648 = vld [vmem:[%s3 + $0x10] sm:$0xff]
        %v649 = vld [vmem:[%s3 + $0x18] sm:$0xff]
        %v650 = vld [vmem:[%s3 + $0x20] sm:$0xff]
        %v651 = vld [vmem:[%s3 + $0x28] sm:$0xff]
        %v652 = vld [vmem:[%s3 + $0x30] sm:$0xff]
        %v653 = vld [vmem:[%s3 + $0x38] sm:$0xff]
        %v654 = vld [vmem:[%s4] sm:$0x1]
        %v656 = vlaneseq
        %v657 = vshrl.u32 %v656, 7
        %v658 = vsub.s32 0, %v657
        %v659 = vrot.slane %v654, %v658
        %v662 = vsel %vm493, %v643, 0
        %v665 = vsel %vm493, %v644, 0
        %v668 = vsel %vm493, %v645, 0
        %670 = vmatprep.subr.mxu0 0.0
        %671 = vmatpush1.msra.mxu0 %v646
        %672 = vmatprep.subr.mxu0 0.0
        %673 = vmatpush1.msra.mxu0 %v647
        %674 = vmatprep.subr.mxu0 0.0
        %675 = vmatpush1.msra.mxu0 %v648
        %676 = vmatprep.subr.mxu0 0.0
        %677 = vmatpush1.msra.mxu0 %v649
        %678 = vmatprep.subr.mxu0 0.0
        %679 = vmatpush1.msra.mxu0 %v650
        %680 = vmatprep.subr.mxu0 0.0
        %681 = vmatpush1.msra.mxu0 %v651
        %682 = vmatprep.subr.mxu0 0.0
        %683 = vmatpush1.msra.mxu0 %v652
        %684 = vmatprep.subr.mxu0 0.0
        %685 = vmatpush1.msra.mxu0 %v653
        %686 = vmatprep.subr.mxu0 0.0
        %687 = vmatpush1.msra.mxu0 0.0
        %688 = vmatprep.subr.mxu0 0.0
        %689 = vmatpush1.msra.mxu0 0.0
        %690 = vmatprep.subr.mxu0 0.0
        %691 = vmatpush1.msra.mxu0 0.0
        %692 = vmatprep.subr.mxu0 0.0
        %693 = vmatpush1.msra.mxu0 0.0
        %694 = vmatprep.subr.mxu0 0.0
        %695 = vmatpush1.msra.mxu0 0.0
        %696 = vmatprep.subr.mxu0 0.0
        %697 = vmatpush1.msra.mxu0 0.0
        %698 = vmatprep.subr.mxu0 0.0
        %699 = vmatpush1.msra.mxu0 0.0
        %700 = vmatprep.subr.mxu0 0.0
        %701 = vmatpush1.msra.mxu0 0.0
        %702 = vmatprep.subr.mxu0 0.0
        %703 = vmatpush1.msra.mxu0 0.0
        %704 = vmatprep.subr.mxu0 0.0
        %705 = vmatpush1.msra.mxu0 0.0
        %706 = vmatprep.subr.mxu0 0.0
        %707 = vmatpush1.msra.mxu0 0.0
        %708 = vmatprep.subr.mxu0 0.0
        %709 = vmatpush1.msra.mxu0 0.0
        %710 = vmatprep.subr.mxu0 0.0
        %711 = vmatpush1.msra.mxu0 0.0
        %712 = vmatprep.subr.mxu0 0.0
        %713 = vmatpush1.msra.mxu0 0.0
        %714 = vmatprep.subr.mxu0 0.0
        %715 = vmatpush1.msra.mxu0 0.0
        %716 = vmatprep.subr.mxu0 0.0
        %717 = vmatpush1.msra.mxu0 0.0
        %718 = vmatprep.subr.mxu0 0.0
        %719 = vmatpush1.msra.mxu0 0.0
        %720 = vmatprep.subr.mxu0 0.0
        %721 = vmatpush1.msra.mxu0 0.0
        %722 = vmatprep.subr.mxu0 0.0
        %723 = vmatpush1.msra.mxu0 0.0
        %724 = vmatprep.subr.mxu0 0.0
        %725 = vmatpush1.msra.mxu0 0.0
        %726 = vmatprep.subr.mxu0 0.0
        %727 = vmatpush1.msra.mxu0 0.0
        %728 = vmatprep.subr.mxu0 0.0
        %729 = vmatpush1.msra.mxu0 0.0
        %730 = vmatprep.subr.mxu0 0.0
        %731 = vmatpush1.msra.mxu0 0.0
        %732 = vmatprep.subr.mxu0 0.0
        %733 = vmatpush1.msra.mxu0 0.0
        %734 = vmatprep.mubr.f32.mxu0 0.0
        %735 = vmatmul.mubr.f32.gmra.mrb[0].mxu0 %v662
        %v736 = vpop.f32.mrb[0].mxu0
        %v737 = vadd.f32 %v659, %v736
        %v738 = vpop.f32.mrb[0].mxu0
        %739 = vmatprep.mubr.f32.mxu0 0.0
        %740 = vmatmul.mubr.f32.gmra.mrb[0].mxu0 %v665
        %v741 = vpop.f32.mrb[0].mxu0
        %v742 = vadd.f32 %v659, %v741
        %v743 = vpop.f32.mrb[0].mxu0
        %744 = vmatprep.mubr.f32.mxu0 0.0
        %745 = vmatmul.mubr.f32.gmra.mrb[0].mxu0 %v668
        %v746 = vpop.f32.mrb[0].mxu0
        %v747 = vadd.f32 %v659, %v746
        %v748 = vpop.f32.mrb[0].mxu0
        %749 = vdwg.mxu0
        %v751 = vrot.slane %v737, 1
        %v753 = vmax.f32 %v737, %v751
        %v755 = vrot.slane %v742, 1
        %v757 = vmax.f32 %v742, %v755
        %v759 = vrot.slane %v747, 1
        %v761 = vmax.f32 %v747, %v759
        %v763 = vrot.slane %v753, 1
        %v765 = vrot.slane %v753, 2
        %v767 = vrot.slane %v753, 3
        %v770 = vrot.slane %v757, 4
        %v772 = vrot.slane %v757, 5
        %v774 = vrot.slane %v757, 6
        %v776 = vrot.slane %v757, 7
        %vm778 = vcmask 1040384
        %v779 = vsel %vm778, %v753, %v763
        %vm780 = vcmask 1041408
        %v781 = vsel %vm780, %v779, %v765
        %vm782 = vcmask 1042432
        %v783 = vsel %vm782, %v781, %v767
        %vm784 = vcmask 1043456
        %v785 = vsel %vm784, %v783, %v770
        %v786 = vsel %vm474, %v785, %v772
        %v787 = vsel %vm459, %v786, %v774
        %v788 = vsel %vm444, %v787, %v776
        %v790 = vrot.slane %v788, 1
        %791 = vrot.lane.b32.xlu0 %v790, 16
        %v792 = vpop.permute.xlu0 %791
        %v795 = vrot.slane %v788, 2
        %v796 = vrot.slane %v761, 2
        %v797 = vsel %vm459, %v795, %v796
        %798 = vrot.lane.b32.xlu0 %v797, 32
        %v799 = vpop.permute.xlu0 %798
        %v801 = vsel %vm635, %v788, %v792
        %v802 = vsel %vm489, %v801, %v799
        %v803 = vld [vmem:[%s5] sm:$0xff]
        %v804 = vld [vmem:[%s5 + $0x8] sm:$0xff]
        %v805 = vld [vmem:[%s5 + $0x10] sm:$0xff]
        %v806 = vld [vmem:[%s5 + $0x18] sm:$0xff]
        %v807 = vld [vmem:[%s5 + $0x20] sm:$0xff]
        %v808 = vld [vmem:[%s5 + $0x28] sm:$0xff]
        %v809 = vld [vmem:[%s6] sm:$0x1]
        %v811 = vlaneseq
        %v812 = vshrl.u32 %v811, 7
        %v813 = vsub.s32 0, %v812
        %v814 = vrot.slane %v809, %v813
        %v817 = vsel %vm642, %v802, 0
        %819 = vmatprep.subr.mxu0 0.0
        %820 = vmatpush1.msra.mxu0 %v803
        %821 = vmatprep.subr.mxu0 0.0
        %822 = vmatpush1.msra.mxu0 %v804
        %823 = vmatprep.subr.mxu0 0.0
        %824 = vmatpush1.msra.mxu0 %v805
        %825 = vmatprep.subr.mxu0 0.0
        %826 = vmatpush1.msra.mxu0 %v806
        %827 = vmatprep.subr.mxu0 0.0
        %828 = vmatpush1.msra.mxu0 %v807
        %829 = vmatprep.subr.mxu0 0.0
        %830 = vmatpush1.msra.mxu0 %v808
        %831 = vmatprep.subr.mxu0 0.0
        %832 = vmatpush1.msra.mxu0 0.0
        %833 = vmatprep.subr.mxu0 0.0
        %834 = vmatpush1.msra.mxu0 0.0
        %835 = vmatprep.subr.mxu0 0.0
        %836 = vmatpush1.msra.mxu0 0.0
        %837 = vmatprep.subr.mxu0 0.0
        %838 = vmatpush1.msra.mxu0 0.0
        %839 = vmatprep.subr.mxu0 0.0
        %840 = vmatpush1.msra.mxu0 0.0
        %841 = vmatprep.subr.mxu0 0.0
        %842 = vmatpush1.msra.mxu0 0.0
        %843 = vmatprep.subr.mxu0 0.0
        %844 = vmatpush1.msra.mxu0 0.0
        %845 = vmatprep.subr.mxu0 0.0
        %846 = vmatpush1.msra.mxu0 0.0
        %847 = vmatprep.subr.mxu0 0.0
        %848 = vmatpush1.msra.mxu0 0.0
        %849 = vmatprep.subr.mxu0 0.0
        %850 = vmatpush1.msra.mxu0 0.0
        %851 = vmatprep.subr.mxu0 0.0
        %852 = vmatpush1.msra.mxu0 0.0
        %853 = vmatprep.subr.mxu0 0.0
        %854 = vmatpush1.msra.mxu0 0.0
        %855 = vmatprep.subr.mxu0 0.0
        %856 = vmatpush1.msra.mxu0 0.0
        %857 = vmatprep.subr.mxu0 0.0
        %858 = vmatpush1.msra.mxu0 0.0
        %859 = vmatprep.subr.mxu0 0.0
        %860 = vmatpush1.msra.mxu0 0.0
        %861 = vmatprep.subr.mxu0 0.0
        %862 = vmatpush1.msra.mxu0 0.0
        %863 = vmatprep.subr.mxu0 0.0
        %864 = vmatpush1.msra.mxu0 0.0
        %865 = vmatprep.subr.mxu0 0.0
        %866 = vmatpush1.msra.mxu0 0.0
        %867 = vmatprep.subr.mxu0 0.0
        %868 = vmatpush1.msra.mxu0 0.0
        %869 = vmatprep.subr.mxu0 0.0
        %870 = vmatpush1.msra.mxu0 0.0
        %871 = vmatprep.subr.mxu0 0.0
        %872 = vmatpush1.msra.mxu0 0.0
        %873 = vmatprep.subr.mxu0 0.0
        %874 = vmatpush1.msra.mxu0 0.0
        %875 = vmatprep.subr.mxu0 0.0
        %876 = vmatpush1.msra.mxu0 0.0
        %877 = vmatprep.subr.mxu0 0.0
        %878 = vmatpush1.msra.mxu0 0.0
        %879 = vmatprep.subr.mxu0 0.0
        %880 = vmatpush1.msra.mxu0 0.0
        %881 = vmatprep.subr.mxu0 0.0
        %882 = vmatpush1.msra.mxu0 0.0
        %883 = vmatprep.mubr.f32.mxu0 0.0
        %884 = vmatmul.mubr.f32.gmra.mrb[0].mxu0 %v817
        %v885 = vpop.f32.mrb[0].mxu0
        %v886 = vadd.f32 %v814, %v885
        %v887 = vpop.f32.mrb[0].mxu0
        %888 = vdwg.mxu0
        %v890 = vrot.slane %v886, 1
        %891 = vrot.lane.b32.xlu0 %v890, 32
        %v892 = vpop.permute.xlu0 %891
        %v894 = vrot.slane %v886, 2
        %895 = vrot.lane.b32.xlu0 %v894, 64
        %v896 = vpop.permute.xlu0 %895
        %v898 = vsel %vm489, %v886, %v892
        %v899 = vsel %vm493, %v898, %v896
        %v900 = vld [vmem:[%s7] sm:$0xff]
        %v901 = vld [vmem:[%s7 + $0x8] sm:$0xff]
        %v902 = vld [vmem:[%s7 + $0x10] sm:$0xff]
        %v903 = vld [vmem:[%s7 + $0x18] sm:$0xff]
        %v904 = vld [vmem:[%s7 + $0x20] sm:$0xff]
        %v905 = vld [vmem:[%s7 + $0x28] sm:$0xff]
        %v906 = vld [vmem:[%s7 + $0x30] sm:$0xff]
        %v907 = vld [vmem:[%s7 + $0x38] sm:$0xff]
        %v908 = vld [vmem:[%s7 + $0x40] sm:$0xff]
        %v909 = vld [vmem:[%s7 + $0x48] sm:$0xff]
        %v910 = vld [vmem:[%s7 + $0x50] sm:$0xff]
        %v911 = vld [vmem:[%s7 + $0x58] sm:$0xff]
        %v912 = vld [vmem:[%s8] sm:$0x1]
        %v914 = vlaneseq
        %v915 = vshrl.u32 %v914, 7
        %v916 = vsub.s32 0, %v915
        %v917 = vrot.slane %v912, %v916
        %v920 = vsel %vm497, %v899, 0
        %922 = vmatprep.subr.mxu0 0.0
        %923 = vmatpush1.msra.mxu0 %v900
        %924 = vmatprep.subr.mxu0 0.0
        %925 = vmatpush1.msra.mxu0 %v901
        %926 = vmatprep.subr.mxu0 0.0
        %927 = vmatpush1.msra.mxu0 %v902
        %928 = vmatprep.subr.mxu0 0.0
        %929 = vmatpush1.msra.mxu0 %v903
        %930 = vmatprep.subr.mxu0 0.0
        %931 = vmatpush1.msra.mxu0 %v904
        %932 = vmatprep.subr.mxu0 0.0
        %933 = vmatpush1.msra.mxu0 %v905
        %934 = vmatprep.subr.mxu0 0.0
        %935 = vmatpush1.msra.mxu0 %v906
        %936 = vmatprep.subr.mxu0 0.0
        %937 = vmatpush1.msra.mxu0 %v907
        %938 = vmatprep.subr.mxu0 0.0
        %939 = vmatpush1.msra.mxu0 %v908
        %940 = vmatprep.subr.mxu0 0.0
        %941 = vmatpush1.msra.mxu0 %v909
        %942 = vmatprep.subr.mxu0 0.0
        %943 = vmatpush1.msra.mxu0 %v910
        %944 = vmatprep.subr.mxu0 0.0
        %945 = vmatpush1.msra.mxu0 %v911
        %946 = vmatprep.subr.mxu0 0.0
        %947 = vmatpush1.msra.mxu0 0.0
        %948 = vmatprep.subr.mxu0 0.0
        %949 = vmatpush1.msra.mxu0 0.0
        %950 = vmatprep.subr.mxu0 0.0
        %951 = vmatpush1.msra.mxu0 0.0
        %952 = vmatprep.subr.mxu0 0.0
        %953 = vmatpush1.msra.mxu0 0.0
        %954 = vmatprep.subr.mxu0 0.0
        %955 = vmatpush1.msra.mxu0 0.0
        %956 = vmatprep.subr.mxu0 0.0
        %957 = vmatpush1.msra.mxu0 0.0
        %958 = vmatprep.subr.mxu0 0.0
        %959 = vmatpush1.msra.mxu0 0.0
        %960 = vmatprep.subr.mxu0 0.0
        %961 = vmatpush1.msra.mxu0 0.0
        %962 = vmatprep.subr.mxu0 0.0
        %963 = vmatpush1.msra.mxu0 0.0
        %964 = vmatprep.subr.mxu0 0.0
        %965 = vmatpush1.msra.mxu0 0.0
        %966 = vmatprep.subr.mxu0 0.0
        %967 = vmatpush1.msra.mxu0 0.0
        %968 = vmatprep.subr.mxu0 0.0
        %969 = vmatpush1.msra.mxu0 0.0
        %970 = vmatprep.subr.mxu0 0.0
        %971 = vmatpush1.msra.mxu0 0.0
        %972 = vmatprep.subr.mxu0 0.0
        %973 = vmatpush1.msra.mxu0 0.0
        %974 = vmatprep.subr.mxu0 0.0
        %975 = vmatpush1.msra.mxu0 0.0
        %976 = vmatprep.subr.mxu0 0.0
        %977 = vmatpush1.msra.mxu0 0.0
        %978 = vmatprep.subr.mxu0 0.0
        %979 = vmatpush1.msra.mxu0 0.0
        %980 = vmatprep.subr.mxu0 0.0
        %981 = vmatpush1.msra.mxu0 0.0
        %982 = vmatprep.subr.mxu0 0.0
        %983 = vmatpush1.msra.mxu0 0.0
        %984 = vmatprep.subr.mxu0 0.0
        %985 = vmatpush1.msra.mxu0 0.0
        %986 = vmatprep.mubr.f32.mxu0 0.0
        %987 = vmatmul.mubr.f32.gmra.mrb[0].mxu0 %v920
        %v988 = vpop.f32.mrb[0].mxu0
        %v989 = vadd.f32 %v917, %v988
        %v990 = vpop.f32.mrb[0].mxu0
        %991 = vdwg.mxu0
        %v993 = vrot.slane %v989, 1
        %v995 = vmax.f32 %v989, %v993
        %v997 = vrot.slane %v995, 1
        %v999 = vsel %vm778, %v995, %v997
        %v1000 = vmul.f32 %v999, 0.01
        %v1001 = vmax.f32 %v999, %v1000
        %v1003 = vrot.slane %v1001, 1
        %1004 = vrot.lane.b32.xlu0 %v1003, 32
        %v1005 = vpop.permute.xlu0 %1004
        %v1007 = vsel %vm489, %v1001, %v1005
        %v1008 = vld [vmem:[%s9] sm:$0xff]
        %v1009 = vld [vmem:[%s9 + $0x8] sm:$0xff]
        %v1010 = vld [vmem:[%s9 + $0x10] sm:$0xff]
        %v1011 = vld [vmem:[%s9 + $0x18] sm:$0xff]
        %v1012 = vld [vmem:[%s9 + $0x20] sm:$0xff]
        %v1013 = vld [vmem:[%s9 + $0x28] sm:$0xff]
        %v1014 = vld [vmem:[%s9 + $0x30] sm:$0xff]
        %v1015 = vld [vmem:[%s9 + $0x38] sm:$0xff]
        %v1016 = vld [vmem:[%s10] sm:$0x1]
        %v1018 = vsel %vm493, %v1007, 0
        %1020 = vmatprep.subr.mxu0 0.0
        %1021 = vmatpush1.msra.mxu0 %v1008
        %1022 = vmatprep.subr.mxu0 0.0
        %1023 = vmatpush1.msra.mxu0 %v1009
        %1024 = vmatprep.subr.mxu0 0.0
        %1025 = vmatpush1.msra.mxu0 %v1010
        %1026 = vmatprep.subr.mxu0 0.0
        %1027 = vmatpush1.msra.mxu0 %v1011
        %1028 = vmatprep.subr.mxu0 0.0
        %1029 = vmatpush1.msra.mxu0 %v1012
        %1030 = vmatprep.subr.mxu0 0.0
        %1031 = vmatpush1.msra.mxu0 %v1013
        %1032 = vmatprep.subr.mxu0 0.0
        %1033 = vmatpush1.msra.mxu0 %v1014
        %1034 = vmatprep.subr.mxu0 0.0
        %1035 = vmatpush1.msra.mxu0 %v1015
        %1036 = vmatprep.subr.mxu0 0.0
        %1037 = vmatpush1.msra.mxu0 0.0
        %1038 = vmatprep.subr.mxu0 0.0
        %1039 = vmatpush1.msra.mxu0 0.0
        %1040 = vmatprep.subr.mxu0 0.0
        %1041 = vmatpush1.msra.mxu0 0.0
        %1042 = vmatprep.subr.mxu0 0.0
        %1043 = vmatpush1.msra.mxu0 0.0
        %1044 = vmatprep.subr.mxu0 0.0
        %1045 = vmatpush1.msra.mxu0 0.0
        %1046 = vmatprep.subr.mxu0 0.0
        %1047 = vmatpush1.msra.mxu0 0.0
        %1048 = vmatprep.subr.mxu0 0.0
        %1049 = vmatpush1.msra.mxu0 0.0
        %1050 = vmatprep.subr.mxu0 0.0
        %1051 = vmatpush1.msra.mxu0 0.0
        %1052 = vmatprep.subr.mxu0 0.0
        %1053 = vmatpush1.msra.mxu0 0.0
        %1054 = vmatprep.subr.mxu0 0.0
        %1055 = vmatpush1.msra.mxu0 0.0
        %1056 = vmatprep.subr.mxu0 0.0
        %1057 = vmatpush1.msra.mxu0 0.0
        %1058 = vmatprep.subr.mxu0 0.0
        %1059 = vmatpush1.msra.mxu0 0.0
        %1060 = vmatprep.subr.mxu0 0.0
        %1061 = vmatpush1.msra.mxu0 0.0
        %1062 = vmatprep.subr.mxu0 0.0
        %1063 = vmatpush1.msra.mxu0 0.0
        %1064 = vmatprep.subr.mxu0 0.0
        %1065 = vmatpush1.msra.mxu0 0.0
        %1066 = vmatprep.subr.mxu0 0.0
        %1067 = vmatpush1.msra.mxu0 0.0
        %1068 = vmatprep.subr.mxu0 0.0
        %1069 = vmatpush1.msra.mxu0 0.0
        %1070 = vmatprep.subr.mxu0 0.0
        %1071 = vmatpush1.msra.mxu0 0.0
        %1072 = vmatprep.subr.mxu0 0.0
        %1073 = vmatpush1.msra.mxu0 0.0
        %1074 = vmatprep.subr.mxu0 0.0
        %1075 = vmatpush1.msra.mxu0 0.0
        %1076 = vmatprep.subr.mxu0 0.0
        %1077 = vmatpush1.msra.mxu0 0.0
        %1078 = vmatprep.subr.mxu0 0.0
        %1079 = vmatpush1.msra.mxu0 0.0
        %1080 = vmatprep.subr.mxu0 0.0
        %1081 = vmatpush1.msra.mxu0 0.0
        %1082 = vmatprep.subr.mxu0 0.0
        %1083 = vmatpush1.msra.mxu0 0.0
        %1084 = vmatprep.mubr.f32.mxu0 0.0
        %1085 = vmatmul.mubr.f32.gmra.mrb[0].mxu0 %v1018
        %v1086 = vpop.f32.mrb[0].mxu0
        %v1087 = vadd.f32 %v1016, %v1086
        %v1088 = vpop.f32.mrb[0].mxu0
        %1089 = vdwg.mxu0
        %v1090 = vld [vmem:[%s11] sm:$0xff]
        %v1091 = vld [vmem:[%s11 + $0x8] sm:$0xff]
        %v1092 = vld [vmem:[%s11 + $0x10] sm:$0xff]
        %v1093 = vld [vmem:[%s11 + $0x18] sm:$0xff]
        %v1094 = vld [vmem:[%s11 + $0x20] sm:$0xff]
        %v1095 = vld [vmem:[%s11 + $0x28] sm:$0xff]
        %v1096 = vld [vmem:[%s11 + $0x30] sm:$0xff]
        %v1097 = vld [vmem:[%s11 + $0x38] sm:$0xff]
        %v1098 = vld [vmem:[%s11 + $0x40] sm:$0xff]
        %v1099 = vld [vmem:[%s11 + $0x48] sm:$0xff]
        %v1100 = vld [vmem:[%s11 + $0x50] sm:$0xff]
        %v1101 = vld [vmem:[%s11 + $0x58] sm:$0xff]
        %v1102 = vld [vmem:[%s11 + $0x60] sm:$0xff]
        %v1103 = vld [vmem:[%s11 + $0x68] sm:$0xff]
        %v1104 = vld [vmem:[%s11 + $0x70] sm:$0xff]
        %v1105 = vld [vmem:[%s11 + $0x78] sm:$0xff]
        %v1106 = vld [vmem:[%s12] sm:$0x1]
        %v1108 = vsel %vm489, %v1087, 0
        %v1111 = vsel %vm489, %v1090, 0
        %v1114 = vsel %vm489, %v1091, 0
        %v1117 = vsel %vm489, %v1092, 0
        %v1120 = vsel %vm489, %v1093, 0
        %v1123 = vsel %vm489, %v1094, 0
        %v1126 = vsel %vm489, %v1095, 0
        %v1129 = vsel %vm489, %v1096, 0
        %v1132 = vsel %vm489, %v1097, 0
        %v1135 = vsel %vm489, %v1098, 0
        %v1138 = vsel %vm489, %v1099, 0
        %v1141 = vsel %vm489, %v1100, 0
        %v1144 = vsel %vm489, %v1101, 0
        %v1147 = vsel %vm489, %v1102, 0
        %v1150 = vsel %vm489, %v1103, 0
        %v1153 = vsel %vm489, %v1104, 0
        %v1156 = vsel %vm489, %v1105, 0
        %1158 = vmatprep.subr.mxu0 0.0
        %1159 = vmatpush1.xpose.msra.mxu0 %v1111
        %1160 = vmatprep.subr.mxu0 0.0
        %1161 = vmatpush1.xpose.msra.mxu0 %v1114
        %1162 = vmatprep.subr.mxu0 0.0
        %1163 = vmatpush1.xpose.msra.mxu0 %v1117
        %1164 = vmatprep.subr.mxu0 0.0
        %1165 = vmatpush1.xpose.msra.mxu0 %v1120
        %1166 = vmatprep.subr.mxu0 0.0
        %1167 = vmatpush1.xpose.msra.mxu0 %v1123
        %1168 = vmatprep.subr.mxu0 0.0
        %1169 = vmatpush1.xpose.msra.mxu0 %v1126
        %1170 = vmatprep.subr.mxu0 0.0
        %1171 = vmatpush1.xpose.msra.mxu0 %v1129
        %1172 = vmatprep.subr.mxu0 0.0
        %1173 = vmatpush1.xpose.msra.mxu0 %v1132
        %1174 = vmatprep.subr.mxu0 0.0
        %1175 = vmatpush1.xpose.msra.mxu0 %v1135
        %1176 = vmatprep.subr.mxu0 0.0
        %1177 = vmatpush1.xpose.msra.mxu0 %v1138
        %1178 = vmatprep.subr.mxu0 0.0
        %1179 = vmatpush1.xpose.msra.mxu0 %v1141
        %1180 = vmatprep.subr.mxu0 0.0
        %1181 = vmatpush1.xpose.msra.mxu0 %v1144
        %1182 = vmatprep.subr.mxu0 0.0
        %1183 = vmatpush1.xpose.msra.mxu0 %v1147
        %1184 = vmatprep.subr.mxu0 0.0
        %1185 = vmatpush1.xpose.msra.mxu0 %v1150
        %1186 = vmatprep.subr.mxu0 0.0
        %1187 = vmatpush1.xpose.msra.mxu0 %v1153
        %1188 = vmatprep.subr.mxu0 0.0
        %1189 = vmatpush1.xpose.msra.mxu0 %v1156
        %1190 = vmatprep.subr.mxu0 0.0
        %1191 = vmatpush1.xpose.msra.mxu0 0.0
        %1192 = vmatprep.subr.mxu0 0.0
        %1193 = vmatpush1.xpose.msra.mxu0 0.0
        %1194 = vmatprep.subr.mxu0 0.0
        %1195 = vmatpush1.xpose.msra.mxu0 0.0
        %1196 = vmatprep.subr.mxu0 0.0
        %1197 = vmatpush1.xpose.msra.mxu0 0.0
        %1198 = vmatprep.subr.mxu0 0.0
        %1199 = vmatpush1.xpose.msra.mxu0 0.0
        %1200 = vmatprep.subr.mxu0 0.0
        %1201 = vmatpush1.xpose.msra.mxu0 0.0
        %1202 = vmatprep.subr.mxu0 0.0
        %1203 = vmatpush1.xpose.msra.mxu0 0.0
        %1204 = vmatprep.subr.mxu0 0.0
        %1205 = vmatpush1.xpose.msra.mxu0 0.0
        %1206 = vmatprep.subr.mxu0 0.0
        %1207 = vmatpush1.xpose.msra.mxu0 0.0
        %1208 = vmatprep.subr.mxu0 0.0
        %1209 = vmatpush1.xpose.msra.mxu0 0.0
        %1210 = vmatprep.subr.mxu0 0.0
        %1211 = vmatpush1.xpose.msra.mxu0 0.0
        %1212 = vmatprep.subr.mxu0 0.0
        %1213 = vmatpush1.xpose.msra.mxu0 0.0
        %1214 = vmatprep.subr.mxu0 0.0
        %1215 = vmatpush1.xpose.msra.mxu0 0.0
        %1216 = vmatprep.subr.mxu0 0.0
        %1217 = vmatpush1.xpose.msra.mxu0 0.0
        %1218 = vmatprep.subr.mxu0 0.0
        %1219 = vmatpush1.xpose.msra.mxu0 0.0
        %1220 = vmatprep.subr.mxu0 0.0
        %1221 = vmatpush1.xpose.msra.mxu0 0.0
        %1222 = vmatprep.mubr.f32.mxu0 0.0
        %1223 = vmatmul.mubr.f32.gmra.mrb[0].mxu0 %v1108
        %v1224 = vpop.f32.mrb[0].mxu0
        %v1225 = vadd.f32 %v1106, %v1224
        %v1226 = vpop.f32.mrb[0].mxu0
        %1227 = vdwg.mxu0
        %1228 = vst [vmem:[%s432] sm:$0x1] %v1225
        %s1229 = sand.u32 %s313, 1
        %s1230 = scalar_lea.sflag [#allocation3], %s1229
        %s1231 = sand.u32 %s313, 1
        %s1232 = scalar_lea.vmem [#allocation2], %s1231
        // Predicated region
        $region73: #{cnn_forward.1} parent=71 // pred_check
          %p1233 = pneg %p323
        $region74: #{cnn_forward.1} parent=71 // pred_check_branch
          %1235 = sbr.rel (%p1233) target = $region76
        $region75: #{cnn_forward.1} parent=71 // pred_region
          %s1237 = ssub.s32 16, 16
          %1238 = vsyncadd %s1230, %s1237
          %s1239 = smul.addr %s27, 16
          %s1240 = scalar_lea.hbm %s13, %s1239
          %s1242 = sshll.u32 %s1232, 4
          %s1243 = int_to_ptr.vmem [resolvable:$true] %s1242
          %1245 = dma.vmem_to_hbm [thread:$0]  %s1243, 16, %s1240, %s1230
        $region76: #{cnn_forward.1} parent=71 // pred_fallthru
          _
      $region72: #{cnn_forward.1} parent=5 // pred_fallthru
        _
      %p1246 = scmp.le.s32.totalorder 2, %s22
      // Predicated region
      $region77: #{cnn_forward.1} parent=5 // pred_check
        %p1247 = pneg %p1246
      $region78: #{cnn_forward.1} parent=5 // pred_check_branch
        %1249 = sbr.rel (%p1247) target = $region80
      $region79: #{cnn_forward.1} parent=5 // pred_region
        %s1250 = ssub.s32 %s22, 2
        // Predicated region
        $region81: #{cnn_forward.1} parent=79 // pred_check
          %p1251 = pneg %p329
        $region82: #{cnn_forward.1} parent=79 // pred_check_branch
          %1253 = sbr.rel (%p1251) target = $region84
        $region83: #{cnn_forward.1} parent=79 // pred_region
          %s1254 = sand.u32 %s314, 1
          %s1255 = scalar_lea.sflag [#allocation3], %s1254
          %s1256 = sand.u32 %s314, 1
          %s1257 = scalar_lea.vmem [#allocation2], %s1256
          %1258 = dma.done %s1255, 16
        $region84: #{cnn_forward.1} parent=79 // pred_fallthru
          _
      $region80: #{cnn_forward.1} parent=5 // pred_fallthru
        _
    $region6: #{cnn_forward.1} parent=1 // loop_footer
      %s26 = sadd.s32 1, %s22
    $region7: #{cnn_forward.1} parent=1 // loop_footer_branch
      %21 = sbr.rel target = $region3
    $region8: #{cnn_forward.1} parent=1 // loop_exit
      _
    %1259 = vsyncpa [#allocation3], 1
    %s1260 = scalar_lea.sflag [#allocation3], 1
    %1261 = vsyncpa %s1260, 1

</llo_original>
